<compile_context>
chip_gen: v7x
topology: tpu7x:2x2x1
jax: 0.10.0
libtpu: 0.0.40
codegen_flags: <defaults>
</compile_context>

<pallas_src>
import jax
import jax.numpy as jnp
from jax.experimental import pallas as pl
from jax.experimental.pallas import tpu as pltpu

# ---- static shape constants implied by the module ----
B = 2             # batch
H = 10            # input height
W = 101           # input width  (gives 16*1*23 = 368 at the flatten)
C1 = 8            # conv1 out channels
KW = 10           # conv1 kernel width (1,10)
W1C = W - KW + 1  # 92   conv1 output width
HP, WP = H // 2, W1C // 2   # 5, 46  after maxpool1 (2,2)
C2 = 16           # conv2 out channels
KH2 = 5           # conv2 kernel height (5,1)
WP2 = WP // 2     # 23   after maxpool2 (1,2)
FLAT = C2 * WP2   # 368
HID = 200
D_LATENT = 10
OUT = 2 * D_LATENT
BN_EPS = 1e-5

NCOL = 2 * B * WP2          # 92  : (parity p, batch b, j) columns after pool1
NCOL_IM2COL = 4 * NCOL      # 368 : (r, q) x (p, b, j) columns of the im2col slab


def encoder_kernel(xc_ref, w1_ref, b1_ref, s1_ref, t1_ref,
                   w2_ref, b2_ref, s2_ref, t2_ref,
                   fw1_ref, fb1_ref, fw2_ref, fb2_ref,
                   out_ref, flat_scr):
    # ---- conv1 (block-diag over the 5 conv2 tap rows, all 4 pool1 taps) : 1 matmul ----
    y = jnp.dot(w1_ref[...], xc_ref[...],
                preferred_element_type=jnp.float32)                       # (40, 368)

    # ---- maxpool1 (2,2): max over the four contiguous (r, q) column blocks ----
    p1 = jnp.maximum(jnp.maximum(y[:, 0 * NCOL:1 * NCOL], y[:, 1 * NCOL:2 * NCOL]),
                     jnp.maximum(y[:, 2 * NCOL:3 * NCOL], y[:, 3 * NCOL:4 * NCOL]))  # (40, 92)

    # conv1 bias commutes with max-pool; then ReLU, then inference BatchNorm1.
    a1 = jnp.maximum(p1 + b1_ref[...], 0.0) * s1_ref[...] + t1_ref[...]   # (40, 92)

    # ---- conv2 (5,1): height collapses -> single (16,40)@(40,92) matmul, both batches ----
    o2 = jnp.dot(w2_ref[...], a1, preferred_element_type=jnp.float32)     # (16, 92)

    # ---- maxpool2 (1,2): the two width-parity halves are contiguous 46-column blocks ----
    m2 = jnp.maximum(o2[:, :B * WP2], o2[:, B * WP2:])                    # (16, 46)
    a2 = jnp.maximum(m2 + b2_ref[...], 0.0) * s2_ref[...] + t2_ref[...]   # (16, 46)

    # ---- channel-major flatten (16, B*23) -> (B, 368) via VMEM scratch ----
    # flat[b, co*23 + j] = a2[co, b*23 + j]   (matches PyTorch's flatten order)
    for b in range(B):
        for co in range(C2):
            flat_scr[b:b + 1, co * WP2:(co + 1) * WP2] = \
                a2[co:co + 1, b * WP2:(b + 1) * WP2]

    # ---- fc1 + ReLU (Dropout is identity in eval) + fc2, whole batch in one matmul each ----
    y1 = jnp.maximum(
        jnp.dot(flat_scr[...], fw1_ref[...], preferred_element_type=jnp.float32)
        + fb1_ref[...], 0.0)                                              # (B, 200)
    out_ref[...] = (jnp.dot(y1, fw2_ref[...], preferred_element_type=jnp.float32)
                    + fb2_ref[...])                                       # (B, 20)


def conv_encoder_forward(x, params):
    f32 = jnp.float32
    xs = x[:, 0, :, :].astype(f32)                                        # (B, H, W)

    # im2col slab for the fused conv1 + maxpool1 matmul (pure layout glue, plain JAX).
    #   rows    : (hp, k)            -> 5*10 = 50
    #   columns : (r, q, p, b, j)    -> 2*2*2*2*23 = 368
    #   with wp = 2*j + p, conv-output col = 2*wp + q, input col = 4*j + 2*p + q + k,
    #        input row = 2*hp + r.
    hp_i = jnp.arange(HP).reshape(HP, 1, 1, 1, 1, 1, 1)
    k_i = jnp.arange(KW).reshape(1, KW, 1, 1, 1, 1, 1)
    r_i = jnp.arange(2).reshape(1, 1, 2, 1, 1, 1, 1)
    q_i = jnp.arange(2).reshape(1, 1, 1, 2, 1, 1, 1)
    p_i = jnp.arange(2).reshape(1, 1, 1, 1, 2, 1, 1)
    b_i = jnp.arange(B).reshape(1, 1, 1, 1, 1, B, 1)
    j_i = jnp.arange(WP2).reshape(1, 1, 1, 1, 1, 1, WP2)
    row_idx = 2 * hp_i + r_i
    col_idx = 4 * j_i + 2 * p_i + q_i + k_i
    xcol = xs[b_i, row_idx, col_idx].reshape(HP * KW, NCOL_IM2COL)        # (50, 368)

    def bn_fold(gamma, beta, rmean, rvar):
        s = gamma / jnp.sqrt(rvar + BN_EPS)
        return s, beta - rmean * s

    s1, t1 = bn_fold(params['bn1_gamma'], params['bn1_beta'],
                     params['bn1_mean'], params['bn1_var'])
    s2, t2 = bn_fold(params['bn2_gamma'], params['bn2_beta'],
                     params['bn2_mean'], params['bn2_var'])

    w1 = params['conv1_w'][:, 0, 0, :]                                    # (8, 10)
    w1_blk = jnp.kron(jnp.eye(HP, dtype=f32), w1)                         # (40, 50) block-diag
    b1_t = jnp.tile(params['conv1_b'], HP)[:, None]                       # (40, 1)
    s1_t = jnp.tile(s1, HP)[:, None]                                      # (40, 1)
    t1_t = jnp.tile(t1, HP)[:, None]                                      # (40, 1)

    # conv2 weight: rows co, cols (kh, ci)  -> matches the (hp, ci) row blocks of a1.
    w2r = jnp.transpose(params['conv2_w'][:, :, :, 0], (0, 2, 1)).reshape(C2, KH2 * C1)

    fw1 = params['fc1_w'].T                                               # (368, 200)
    fw2 = params['fc2_w'].T                                               # (200, 20)

    args = (xcol,
            w1_blk, b1_t, s1_t, t1_t,
            w2r, params['conv2_b'][:, None], s2[:, None], t2[:, None],
            fw1, params['fc1_b'][None, :], fw2, params['fc2_b'][None, :])

    vmem = pl.BlockSpec(memory_space=pltpu.MemorySpace.VMEM)
    h = pl.pallas_call(
        encoder_kernel,
        out_shape=jax.ShapeDtypeStruct((B, OUT), jnp.float32),
        in_specs=[vmem] * len(args),
        out_specs=vmem,
        scratch_shapes=[pltpu.VMEM((B, FLAT), jnp.float32)],
    )(*args)

    mu = h[:, :D_LATENT]
    log_var = h[:, D_LATENT:]
    # TODO(synk): torch.distributions.Normal has no Pallas equivalent; we return its
    # parameters (mu, scale=exp(log_var)) exactly as the module constructs them.
    return mu, jnp.exp(log_var)


def reference_forward(x, params):
    """Plain-JAX reference, mirrors the PyTorch forward (eval mode)."""
    hi = jax.lax.Precision.HIGHEST
    xs = x[:, 0]                                                          # (B, H, W)
    w1 = params['conv1_w'][:, 0, 0, :]                                    # (C1, KW)
    patches = jnp.stack([xs[:, :, k:k + W1C] for k in range(KW)], axis=-1)
    o1 = jnp.einsum('bhwk,ck->bchw', patches, w1, precision=hi)
    o1 = o1 + params['conv1_b'][None, :, None, None]
    p1 = o1.reshape(B, C1, HP, 2, WP, 2).max(axis=(3, 5))
    s1 = params['bn1_gamma'] / jnp.sqrt(params['bn1_var'] + BN_EPS)
    t1 = params['bn1_beta'] - params['bn1_mean'] * s1
    a1 = jax.nn.relu(p1) * s1[None, :, None, None] + t1[None, :, None, None]

    w2 = params['conv2_w'][:, :, :, 0]                                    # (C2, C1, KH2)
    o2 = jnp.einsum('bchw,och->bow', a1, w2, precision=hi)
    o2 = o2 + params['conv2_b'][None, :, None]
    p2 = o2.reshape(B, C2, WP2, 2).max(axis=-1)
    s2 = params['bn2_gamma'] / jnp.sqrt(params['bn2_var'] + BN_EPS)
    t2 = params['bn2_beta'] - params['bn2_mean'] * s2
    a2 = jax.nn.relu(p2) * s2[None, :, None] + t2[None, :, None]

    flat = a2.reshape(B, FLAT)
    y1 = jax.nn.relu(jnp.matmul(flat, params['fc1_w'].T, precision=hi) + params['fc1_b'])
    h = jnp.matmul(y1, params['fc2_w'].T, precision=hi) + params['fc2_b']
    return h[:, :D_LATENT], jnp.exp(h[:, D_LATENT:])


if __name__ == "__main__":
    f32 = jnp.float32
    ks = jax.random.split(jax.random.PRNGKey(0), 16)
    params = {
        'conv1_w': 0.1 * jax.random.normal(ks[0], (C1, 1, 1, KW), f32),
        'conv1_b': 0.1 * jax.random.normal(ks[1], (C1,), f32),
        'bn1_gamma': 1.0 + 0.1 * jax.random.normal(ks[2], (C1,), f32),
        'bn1_beta': 0.1 * jax.random.normal(ks[3], (C1,), f32),
        'bn1_mean': 0.1 * jax.random.normal(ks[4], (C1,), f32),
        'bn1_var': jax.random.uniform(ks[5], (C1,), f32, 0.5, 1.5),
        'conv2_w': 0.1 * jax.random.normal(ks[6], (C2, C1, KH2, 1), f32),
        'conv2_b': 0.1 * jax.random.normal(ks[7], (C2,), f32),
        'bn2_gamma': 1.0 + 0.1 * jax.random.normal(ks[8], (C2,), f32),
        'bn2_beta': 0.1 * jax.random.normal(ks[9], (C2,), f32),
        'bn2_mean': 0.1 * jax.random.normal(ks[10], (C2,), f32),
        'bn2_var': jax.random.uniform(ks[11], (C2,), f32, 0.5, 1.5),
        'fc1_w': 0.05 * jax.random.normal(ks[12], (HID, FLAT), f32),
        'fc1_b': 0.05 * jax.random.normal(ks[13], (HID,), f32),
        'fc2_w': 0.05 * jax.random.normal(ks[14], (OUT, HID), f32),
        'fc2_b': 0.05 * jax.random.normal(ks[15], (OUT,), f32),
    }
    x = jax.random.normal(jax.random.PRNGKey(1), (B, 1, H, W), f32)       # NCHW like PyTorch

    mu, scale = jax.block_until_ready(conv_encoder_forward(x, params))
    mu_ref, scale_ref = reference_forward(x, params)

    assert mu.shape == (B, D_LATENT) and scale.shape == (B, D_LATENT)
    assert jnp.allclose(mu, mu_ref, atol=5e-3, rtol=5e-3)
    assert jnp.allclose(scale, scale_ref, atol=5e-3, rtol=5e-3)
    print("KERNEL_OK")
</pallas_src>

<mosaic_0001>
module attributes {stable_mosaic.version = 11 : i64} {
  func.func @encoder_kernel(%arg0: memref<50x368xf32, #tpu.memory_space<vmem>>, %arg1: memref<40x50xf32, #tpu.memory_space<vmem>>, %arg2: memref<40x1xf32, #tpu.memory_space<vmem>>, %arg3: memref<40x1xf32, #tpu.memory_space<vmem>>, %arg4: memref<40x1xf32, #tpu.memory_space<vmem>>, %arg5: memref<16x40xf32, #tpu.memory_space<vmem>>, %arg6: memref<16x1xf32, #tpu.memory_space<vmem>>, %arg7: memref<16x1xf32, #tpu.memory_space<vmem>>, %arg8: memref<16x1xf32, #tpu.memory_space<vmem>>, %arg9: memref<368x200xf32, #tpu.memory_space<vmem>>, %arg10: memref<1x200xf32, #tpu.memory_space<vmem>>, %arg11: memref<200x20xf32, #tpu.memory_space<vmem>>, %arg12: memref<1x20xf32, #tpu.memory_space<vmem>>, %arg13: memref<2x20xf32, #tpu.memory_space<vmem>>, %arg14: memref<2x368xf32, #tpu.memory_space<vmem>>) attributes {dimension_semantics = [], scalar_prefetch = 0 : i64, scratch_operands = 1 : i64, tpu.core_type = #tpu.core_type<tc>} {
    %c0 = arith.constant 0 : index
    %c0_0 = arith.constant 0 : index
    %0 = vector.load %arg1[%c0, %c0_0] : memref<40x50xf32, #tpu.memory_space<vmem>>, vector<40x50xf32>
    %c0_1 = arith.constant 0 : index
    %c0_2 = arith.constant 0 : index
    %1 = vector.load %arg0[%c0_1, %c0_2] : memref<50x368xf32, #tpu.memory_space<vmem>>, vector<50x368xf32>
    %cst = arith.constant dense<0.000000e+00> : vector<40x368xf32>
    %2 = tpu.matmul %0, %1, %cst {dimension_numbers = #tpu.dot_dimension_numbers<[1], [0], [0], [1], [0, 0, 1, 1], [], []>} : vector<40x50xf32>, vector<50x368xf32>, vector<40x368xf32> -> vector<40x368xf32>
    %3 = vector.extract_strided_slice %2 {offsets = [0, 0], sizes = [40, 92], strides = [1, 1]} : vector<40x368xf32> to vector<40x92xf32>
    %4 = vector.extract_strided_slice %2 {offsets = [0, 92], sizes = [40, 92], strides = [1, 1]} : vector<40x368xf32> to vector<40x92xf32>
    %5 = arith.maximumf %3, %4 : vector<40x92xf32>
    %6 = vector.extract_strided_slice %2 {offsets = [0, 184], sizes = [40, 92], strides = [1, 1]} : vector<40x368xf32> to vector<40x92xf32>
    %7 = vector.extract_strided_slice %2 {offsets = [0, 276], sizes = [40, 92], strides = [1, 1]} : vector<40x368xf32> to vector<40x92xf32>
    %8 = arith.maximumf %6, %7 : vector<40x92xf32>
    %9 = arith.maximumf %5, %8 : vector<40x92xf32>
    %c0_3 = arith.constant 0 : index
    %c0_4 = arith.constant 0 : index
    %10 = vector.load %arg2[%c0_3, %c0_4] : memref<40x1xf32, #tpu.memory_space<vmem>>, vector<40x1xf32>
    %11 = vector.broadcast %10 : vector<40x1xf32> to vector<40x92xf32>
    %12 = arith.addf %9, %11 : vector<40x92xf32>
    %cst_5 = arith.constant 0.000000e+00 : f32
    %13 = vector.broadcast %cst_5 : f32 to vector<40x92xf32>
    %14 = arith.maximumf %12, %13 : vector<40x92xf32>
    %c0_6 = arith.constant 0 : index
    %c0_7 = arith.constant 0 : index
    %15 = vector.load %arg3[%c0_6, %c0_7] : memref<40x1xf32, #tpu.memory_space<vmem>>, vector<40x1xf32>
    %16 = vector.broadcast %15 : vector<40x1xf32> to vector<40x92xf32>
    %17 = arith.mulf %14, %16 : vector<40x92xf32>
    %c0_8 = arith.constant 0 : index
    %c0_9 = arith.constant 0 : index
    %18 = vector.load %arg4[%c0_8, %c0_9] : memref<40x1xf32, #tpu.memory_space<vmem>>, vector<40x1xf32>
    %19 = vector.broadcast %18 : vector<40x1xf32> to vector<40x92xf32>
    %20 = arith.addf %17, %19 : vector<40x92xf32>
    %c0_10 = arith.constant 0 : index
    %c0_11 = arith.constant 0 : index
    %21 = vector.load %arg5[%c0_10, %c0_11] : memref<16x40xf32, #tpu.memory_space<vmem>>, vector<16x40xf32>
    %cst_12 = arith.constant dense<0.000000e+00> : vector<16x92xf32>
    %22 = tpu.matmul %21, %20, %cst_12 {dimension_numbers = #tpu.dot_dimension_numbers<[1], [0], [0], [1], [0, 0, 1, 1], [], []>} : vector<16x40xf32>, vector<40x92xf32>, vector<16x92xf32> -> vector<16x92xf32>
    %23 = vector.extract_strided_slice %22 {offsets = [0, 0], sizes = [16, 46], strides = [1, 1]} : vector<16x92xf32> to vector<16x46xf32>
    %24 = vector.extract_strided_slice %22 {offsets = [0, 46], sizes = [16, 46], strides = [1, 1]} : vector<16x92xf32> to vector<16x46xf32>
    %25 = arith.maximumf %23, %24 : vector<16x46xf32>
    %c0_13 = arith.constant 0 : index
    %c0_14 = arith.constant 0 : index
    %26 = vector.load %arg6[%c0_13, %c0_14] : memref<16x1xf32, #tpu.memory_space<vmem>>, vector<16x1xf32>
    %27 = vector.broadcast %26 : vector<16x1xf32> to vector<16x46xf32>
    %28 = arith.addf %25, %27 : vector<16x46xf32>
    %cst_15 = arith.constant 0.000000e+00 : f32
    %29 = vector.broadcast %cst_15 : f32 to vector<16x46xf32>
    %30 = arith.maximumf %28, %29 : vector<16x46xf32>
    %c0_16 = arith.constant 0 : index
    %c0_17 = arith.constant 0 : index
    %31 = vector.load %arg7[%c0_16, %c0_17] : memref<16x1xf32, #tpu.memory_space<vmem>>, vector<16x1xf32>
    %32 = vector.broadcast %31 : vector<16x1xf32> to vector<16x46xf32>
    %33 = arith.mulf %30, %32 : vector<16x46xf32>
    %c0_18 = arith.constant 0 : index
    %c0_19 = arith.constant 0 : index
    %34 = vector.load %arg8[%c0_18, %c0_19] : memref<16x1xf32, #tpu.memory_space<vmem>>, vector<16x1xf32>
    %35 = vector.broadcast %34 : vector<16x1xf32> to vector<16x46xf32>
    %36 = arith.addf %33, %35 : vector<16x46xf32>
    %37 = vector.extract_strided_slice %36 {offsets = [0, 0], sizes = [1, 23], strides = [1, 1]} : vector<16x46xf32> to vector<1x23xf32>
    %c0_20 = arith.constant 0 : index
    %c0_21 = arith.constant 0 : index
    %38 = vector.load %arg14[%c0_20, %c0_21] : memref<2x368xf32, #tpu.memory_space<vmem>>, vector<1x23xf32>
    tpu.vector_store %arg14[%c0_20, %c0_21], %37 {strides = array<i32>} : memref<2x368xf32, #tpu.memory_space<vmem>>, vector<1x23xf32>,
    %39 = vector.extract_strided_slice %36 {offsets = [1, 0], sizes = [1, 23], strides = [1, 1]} : vector<16x46xf32> to vector<1x23xf32>
    %c0_22 = arith.constant 0 : index
    %c23 = arith.constant 23 : index
    %40 = vector.load %arg14[%c0_22, %c23] : memref<2x368xf32, #tpu.memory_space<vmem>>, vector<1x23xf32>
    tpu.vector_store %arg14[%c0_22, %c23], %39 {strides = array<i32>} : memref<2x368xf32, #tpu.memory_space<vmem>>, vector<1x23xf32>,
    %41 = vector.extract_strided_slice %36 {offsets = [2, 0], sizes = [1, 23], strides = [1, 1]} : vector<16x46xf32> to vector<1x23xf32>
    %c0_23 = arith.constant 0 : index
    %c46 = arith.constant 46 : index
    %42 = vector.load %arg14[%c0_23, %c46] : memref<2x368xf32, #tpu.memory_space<vmem>>, vector<1x23xf32>
    tpu.vector_store %arg14[%c0_23, %c46], %41 {strides = array<i32>} : memref<2x368xf32, #tpu.memory_space<vmem>>, vector<1x23xf32>,
    %43 = vector.extract_strided_slice %36 {offsets = [3, 0], sizes = [1, 23], strides = [1, 1]} : vector<16x46xf32> to vector<1x23xf32>
    %c0_24 = arith.constant 0 : index
    %c69 = arith.constant 69 : index
    %44 = vector.load %arg14[%c0_24, %c69] : memref<2x368xf32, #tpu.memory_space<vmem>>, vector<1x23xf32>
    tpu.vector_store %arg14[%c0_24, %c69], %43 {strides = array<i32>} : memref<2x368xf32, #tpu.memory_space<vmem>>, vector<1x23xf32>,
    %45 = vector.extract_strided_slice %36 {offsets = [4, 0], sizes = [1, 23], strides = [1, 1]} : vector<16x46xf32> to vector<1x23xf32>
    %c0_25 = arith.constant 0 : index
    %c92 = arith.constant 92 : index
    %46 = vector.load %arg14[%c0_25, %c92] : memref<2x368xf32, #tpu.memory_space<vmem>>, vector<1x23xf32>
    tpu.vector_store %arg14[%c0_25, %c92], %45 {strides = array<i32>} : memref<2x368xf32, #tpu.memory_space<vmem>>, vector<1x23xf32>,
    %47 = vector.extract_strided_slice %36 {offsets = [5, 0], sizes = [1, 23], strides = [1, 1]} : vector<16x46xf32> to vector<1x23xf32>
    %c0_26 = arith.constant 0 : index
    %c115 = arith.constant 115 : index
    %48 = vector.load %arg14[%c0_26, %c115] : memref<2x368xf32, #tpu.memory_space<vmem>>, vector<1x23xf32>
    tpu.vector_store %arg14[%c0_26, %c115], %47 {strides = array<i32>} : memref<2x368xf32, #tpu.memory_space<vmem>>, vector<1x23xf32>,
    %49 = vector.extract_strided_slice %36 {offsets = [6, 0], sizes = [1, 23], strides = [1, 1]} : vector<16x46xf32> to vector<1x23xf32>
    %c0_27 = arith.constant 0 : index
    %c138 = arith.constant 138 : index
    %50 = vector.load %arg14[%c0_27, %c138] : memref<2x368xf32, #tpu.memory_space<vmem>>, vector<1x23xf32>
    tpu.vector_store %arg14[%c0_27, %c138], %49 {strides = array<i32>} : memref<2x368xf32, #tpu.memory_space<vmem>>, vector<1x23xf32>,
    %51 = vector.extract_strided_slice %36 {offsets = [7, 0], sizes = [1, 23], strides = [1, 1]} : vector<16x46xf32> to vector<1x23xf32>
    %c0_28 = arith.constant 0 : index
    %c161 = arith.constant 161 : index
    %52 = vector.load %arg14[%c0_28, %c161] : memref<2x368xf32, #tpu.memory_space<vmem>>, vector<1x23xf32>
    tpu.vector_store %arg14[%c0_28, %c161], %51 {strides = array<i32>} : memref<2x368xf32, #tpu.memory_space<vmem>>, vector<1x23xf32>,
    %53 = vector.extract_strided_slice %36 {offsets = [8, 0], sizes = [1, 23], strides = [1, 1]} : vector<16x46xf32> to vector<1x23xf32>
    %c0_29 = arith.constant 0 : index
    %c184 = arith.constant 184 : index
    %54 = vector.load %arg14[%c0_29, %c184] : memref<2x368xf32, #tpu.memory_space<vmem>>, vector<1x23xf32>
    tpu.vector_store %arg14[%c0_29, %c184], %53 {strides = array<i32>} : memref<2x368xf32, #tpu.memory_space<vmem>>, vector<1x23xf32>,
    %55 = vector.extract_strided_slice %36 {offsets = [9, 0], sizes = [1, 23], strides = [1, 1]} : vector<16x46xf32> to vector<1x23xf32>
    %c0_30 = arith.constant 0 : index
    %c207 = arith.constant 207 : index
    %56 = vector.load %arg14[%c0_30, %c207] : memref<2x368xf32, #tpu.memory_space<vmem>>, vector<1x23xf32>
    tpu.vector_store %arg14[%c0_30, %c207], %55 {strides = array<i32>} : memref<2x368xf32, #tpu.memory_space<vmem>>, vector<1x23xf32>,
    %57 = vector.extract_strided_slice %36 {offsets = [10, 0], sizes = [1, 23], strides = [1, 1]} : vector<16x46xf32> to vector<1x23xf32>
    %c0_31 = arith.constant 0 : index
    %c230 = arith.constant 230 : index
    %58 = vector.load %arg14[%c0_31, %c230] : memref<2x368xf32, #tpu.memory_space<vmem>>, vector<1x23xf32>
    tpu.vector_store %arg14[%c0_31, %c230], %57 {strides = array<i32>} : memref<2x368xf32, #tpu.memory_space<vmem>>, vector<1x23xf32>,
    %59 = vector.extract_strided_slice %36 {offsets = [11, 0], sizes = [1, 23], strides = [1, 1]} : vector<16x46xf32> to vector<1x23xf32>
    %c0_32 = arith.constant 0 : index
    %c253 = arith.constant 253 : index
    %60 = vector.load %arg14[%c0_32, %c253] : memref<2x368xf32, #tpu.memory_space<vmem>>, vector<1x23xf32>
    tpu.vector_store %arg14[%c0_32, %c253], %59 {strides = array<i32>} : memref<2x368xf32, #tpu.memory_space<vmem>>, vector<1x23xf32>,
    %61 = vector.extract_strided_slice %36 {offsets = [12, 0], sizes = [1, 23], strides = [1, 1]} : vector<16x46xf32> to vector<1x23xf32>
    %c0_33 = arith.constant 0 : index
    %c276 = arith.constant 276 : index
    %62 = vector.load %arg14[%c0_33, %c276] : memref<2x368xf32, #tpu.memory_space<vmem>>, vector<1x23xf32>
    tpu.vector_store %arg14[%c0_33, %c276], %61 {strides = array<i32>} : memref<2x368xf32, #tpu.memory_space<vmem>>, vector<1x23xf32>,
    %63 = vector.extract_strided_slice %36 {offsets = [13, 0], sizes = [1, 23], strides = [1, 1]} : vector<16x46xf32> to vector<1x23xf32>
    %c0_34 = arith.constant 0 : index
    %c299 = arith.constant 299 : index
    %64 = vector.load %arg14[%c0_34, %c299] : memref<2x368xf32, #tpu.memory_space<vmem>>, vector<1x23xf32>
    tpu.vector_store %arg14[%c0_34, %c299], %63 {strides = array<i32>} : memref<2x368xf32, #tpu.memory_space<vmem>>, vector<1x23xf32>,
    %65 = vector.extract_strided_slice %36 {offsets = [14, 0], sizes = [1, 23], strides = [1, 1]} : vector<16x46xf32> to vector<1x23xf32>
    %c0_35 = arith.constant 0 : index
    %c322 = arith.constant 322 : index
    %66 = vector.load %arg14[%c0_35, %c322] : memref<2x368xf32, #tpu.memory_space<vmem>>, vector<1x23xf32>
    tpu.vector_store %arg14[%c0_35, %c322], %65 {strides = array<i32>} : memref<2x368xf32, #tpu.memory_space<vmem>>, vector<1x23xf32>,
    %67 = vector.extract_strided_slice %36 {offsets = [15, 0], sizes = [1, 23], strides = [1, 1]} : vector<16x46xf32> to vector<1x23xf32>
    %c0_36 = arith.constant 0 : index
    %c345 = arith.constant 345 : index
    %68 = vector.load %arg14[%c0_36, %c345] : memref<2x368xf32, #tpu.memory_space<vmem>>, vector<1x23xf32>
    tpu.vector_store %arg14[%c0_36, %c345], %67 {strides = array<i32>} : memref<2x368xf32, #tpu.memory_space<vmem>>, vector<1x23xf32>,
    %69 = vector.extract_strided_slice %36 {offsets = [0, 23], sizes = [1, 23], strides = [1, 1]} : vector<16x46xf32> to vector<1x23xf32>
    %c1 = arith.constant 1 : index
    %c0_37 = arith.constant 0 : index
    %70 = vector.load %arg14[%c1, %c0_37] : memref<2x368xf32, #tpu.memory_space<vmem>>, vector<1x23xf32>
    tpu.vector_store %arg14[%c1, %c0_37], %69 {strides = array<i32>} : memref<2x368xf32, #tpu.memory_space<vmem>>, vector<1x23xf32>,
    %71 = vector.extract_strided_slice %36 {offsets = [1, 23], sizes = [1, 23], strides = [1, 1]} : vector<16x46xf32> to vector<1x23xf32>
    %c1_38 = arith.constant 1 : index
    %c23_39 = arith.constant 23 : index
    %72 = vector.load %arg14[%c1_38, %c23_39] : memref<2x368xf32, #tpu.memory_space<vmem>>, vector<1x23xf32>
    tpu.vector_store %arg14[%c1_38, %c23_39], %71 {strides = array<i32>} : memref<2x368xf32, #tpu.memory_space<vmem>>, vector<1x23xf32>,
    %73 = vector.extract_strided_slice %36 {offsets = [2, 23], sizes = [1, 23], strides = [1, 1]} : vector<16x46xf32> to vector<1x23xf32>
    %c1_40 = arith.constant 1 : index
    %c46_41 = arith.constant 46 : index
    %74 = vector.load %arg14[%c1_40, %c46_41] : memref<2x368xf32, #tpu.memory_space<vmem>>, vector<1x23xf32>
    tpu.vector_store %arg14[%c1_40, %c46_41], %73 {strides = array<i32>} : memref<2x368xf32, #tpu.memory_space<vmem>>, vector<1x23xf32>,
    %75 = vector.extract_strided_slice %36 {offsets = [3, 23], sizes = [1, 23], strides = [1, 1]} : vector<16x46xf32> to vector<1x23xf32>
    %c1_42 = arith.constant 1 : index
    %c69_43 = arith.constant 69 : index
    %76 = vector.load %arg14[%c1_42, %c69_43] : memref<2x368xf32, #tpu.memory_space<vmem>>, vector<1x23xf32>
    tpu.vector_store %arg14[%c1_42, %c69_43], %75 {strides = array<i32>} : memref<2x368xf32, #tpu.memory_space<vmem>>, vector<1x23xf32>,
    %77 = vector.extract_strided_slice %36 {offsets = [4, 23], sizes = [1, 23], strides = [1, 1]} : vector<16x46xf32> to vector<1x23xf32>
    %c1_44 = arith.constant 1 : index
    %c92_45 = arith.constant 92 : index
    %78 = vector.load %arg14[%c1_44, %c92_45] : memref<2x368xf32, #tpu.memory_space<vmem>>, vector<1x23xf32>
    tpu.vector_store %arg14[%c1_44, %c92_45], %77 {strides = array<i32>} : memref<2x368xf32, #tpu.memory_space<vmem>>, vector<1x23xf32>,
    %79 = vector.extract_strided_slice %36 {offsets = [5, 23], sizes = [1, 23], strides = [1, 1]} : vector<16x46xf32> to vector<1x23xf32>
    %c1_46 = arith.constant 1 : index
    %c115_47 = arith.constant 115 : index
    %80 = vector.load %arg14[%c1_46, %c115_47] : memref<2x368xf32, #tpu.memory_space<vmem>>, vector<1x23xf32>
    tpu.vector_store %arg14[%c1_46, %c115_47], %79 {strides = array<i32>} : memref<2x368xf32, #tpu.memory_space<vmem>>, vector<1x23xf32>,
    %81 = vector.extract_strided_slice %36 {offsets = [6, 23], sizes = [1, 23], strides = [1, 1]} : vector<16x46xf32> to vector<1x23xf32>
    %c1_48 = arith.constant 1 : index
    %c138_49 = arith.constant 138 : index
    %82 = vector.load %arg14[%c1_48, %c138_49] : memref<2x368xf32, #tpu.memory_space<vmem>>, vector<1x23xf32>
    tpu.vector_store %arg14[%c1_48, %c138_49], %81 {strides = array<i32>} : memref<2x368xf32, #tpu.memory_space<vmem>>, vector<1x23xf32>,
    %83 = vector.extract_strided_slice %36 {offsets = [7, 23], sizes = [1, 23], strides = [1, 1]} : vector<16x46xf32> to vector<1x23xf32>
    %c1_50 = arith.constant 1 : index
    %c161_51 = arith.constant 161 : index
    %84 = vector.load %arg14[%c1_50, %c161_51] : memref<2x368xf32, #tpu.memory_space<vmem>>, vector<1x23xf32>
    tpu.vector_store %arg14[%c1_50, %c161_51], %83 {strides = array<i32>} : memref<2x368xf32, #tpu.memory_space<vmem>>, vector<1x23xf32>,
    %85 = vector.extract_strided_slice %36 {offsets = [8, 23], sizes = [1, 23], strides = [1, 1]} : vector<16x46xf32> to vector<1x23xf32>
    %c1_52 = arith.constant 1 : index
    %c184_53 = arith.constant 184 : index
    %86 = vector.load %arg14[%c1_52, %c184_53] : memref<2x368xf32, #tpu.memory_space<vmem>>, vector<1x23xf32>
    tpu.vector_store %arg14[%c1_52, %c184_53], %85 {strides = array<i32>} : memref<2x368xf32, #tpu.memory_space<vmem>>, vector<1x23xf32>,
    %87 = vector.extract_strided_slice %36 {offsets = [9, 23], sizes = [1, 23], strides = [1, 1]} : vector<16x46xf32> to vector<1x23xf32>
    %c1_54 = arith.constant 1 : index
    %c207_55 = arith.constant 207 : index
    %88 = vector.load %arg14[%c1_54, %c207_55] : memref<2x368xf32, #tpu.memory_space<vmem>>, vector<1x23xf32>
    tpu.vector_store %arg14[%c1_54, %c207_55], %87 {strides = array<i32>} : memref<2x368xf32, #tpu.memory_space<vmem>>, vector<1x23xf32>,
    %89 = vector.extract_strided_slice %36 {offsets = [10, 23], sizes = [1, 23], strides = [1, 1]} : vector<16x46xf32> to vector<1x23xf32>
    %c1_56 = arith.constant 1 : index
    %c230_57 = arith.constant 230 : index
    %90 = vector.load %arg14[%c1_56, %c230_57] : memref<2x368xf32, #tpu.memory_space<vmem>>, vector<1x23xf32>
    tpu.vector_store %arg14[%c1_56, %c230_57], %89 {strides = array<i32>} : memref<2x368xf32, #tpu.memory_space<vmem>>, vector<1x23xf32>,
    %91 = vector.extract_strided_slice %36 {offsets = [11, 23], sizes = [1, 23], strides = [1, 1]} : vector<16x46xf32> to vector<1x23xf32>
    %c1_58 = arith.constant 1 : index
    %c253_59 = arith.constant 253 : index
    %92 = vector.load %arg14[%c1_58, %c253_59] : memref<2x368xf32, #tpu.memory_space<vmem>>, vector<1x23xf32>
    tpu.vector_store %arg14[%c1_58, %c253_59], %91 {strides = array<i32>} : memref<2x368xf32, #tpu.memory_space<vmem>>, vector<1x23xf32>,
    %93 = vector.extract_strided_slice %36 {offsets = [12, 23], sizes = [1, 23], strides = [1, 1]} : vector<16x46xf32> to vector<1x23xf32>
    %c1_60 = arith.constant 1 : index
    %c276_61 = arith.constant 276 : index
    %94 = vector.load %arg14[%c1_60, %c276_61] : memref<2x368xf32, #tpu.memory_space<vmem>>, vector<1x23xf32>
    tpu.vector_store %arg14[%c1_60, %c276_61], %93 {strides = array<i32>} : memref<2x368xf32, #tpu.memory_space<vmem>>, vector<1x23xf32>,
    %95 = vector.extract_strided_slice %36 {offsets = [13, 23], sizes = [1, 23], strides = [1, 1]} : vector<16x46xf32> to vector<1x23xf32>
    %c1_62 = arith.constant 1 : index
    %c299_63 = arith.constant 299 : index
    %96 = vector.load %arg14[%c1_62, %c299_63] : memref<2x368xf32, #tpu.memory_space<vmem>>, vector<1x23xf32>
    tpu.vector_store %arg14[%c1_62, %c299_63], %95 {strides = array<i32>} : memref<2x368xf32, #tpu.memory_space<vmem>>, vector<1x23xf32>,
    %97 = vector.extract_strided_slice %36 {offsets = [14, 23], sizes = [1, 23], strides = [1, 1]} : vector<16x46xf32> to vector<1x23xf32>
    %c1_64 = arith.constant 1 : index
    %c322_65 = arith.constant 322 : index
    %98 = vector.load %arg14[%c1_64, %c322_65] : memref<2x368xf32, #tpu.memory_space<vmem>>, vector<1x23xf32>
    tpu.vector_store %arg14[%c1_64, %c322_65], %97 {strides = array<i32>} : memref<2x368xf32, #tpu.memory_space<vmem>>, vector<1x23xf32>,
    %99 = vector.extract_strided_slice %36 {offsets = [15, 23], sizes = [1, 23], strides = [1, 1]} : vector<16x46xf32> to vector<1x23xf32>
    %c1_66 = arith.constant 1 : index
    %c345_67 = arith.constant 345 : index
    %100 = vector.load %arg14[%c1_66, %c345_67] : memref<2x368xf32, #tpu.memory_space<vmem>>, vector<1x23xf32>
    tpu.vector_store %arg14[%c1_66, %c345_67], %99 {strides = array<i32>} : memref<2x368xf32, #tpu.memory_space<vmem>>, vector<1x23xf32>,
    %c0_68 = arith.constant 0 : index
    %c0_69 = arith.constant 0 : index
    %101 = vector.load %arg14[%c0_68, %c0_69] : memref<2x368xf32, #tpu.memory_space<vmem>>, vector<2x368xf32>
    %c0_70 = arith.constant 0 : index
    %c0_71 = arith.constant 0 : index
    %102 = vector.load %arg9[%c0_70, %c0_71] : memref<368x200xf32, #tpu.memory_space<vmem>>, vector<368x200xf32>
    %cst_72 = arith.constant dense<0.000000e+00> : vector<2x200xf32>
    %103 = tpu.matmul %101, %102, %cst_72 {dimension_numbers = #tpu.dot_dimension_numbers<[1], [0], [0], [1], [0, 0, 1, 1], [], []>} : vector<2x368xf32>, vector<368x200xf32>, vector<2x200xf32> -> vector<2x200xf32>
    %c0_73 = arith.constant 0 : index
    %c0_74 = arith.constant 0 : index
    %104 = vector.load %arg10[%c0_73, %c0_74] : memref<1x200xf32, #tpu.memory_space<vmem>>, vector<1x200xf32>
    %105 = vector.broadcast %104 : vector<1x200xf32> to vector<2x200xf32>
    %106 = arith.addf %103, %105 : vector<2x200xf32>
    %cst_75 = arith.constant 0.000000e+00 : f32
    %107 = vector.broadcast %cst_75 : f32 to vector<2x200xf32>
    %108 = arith.maximumf %106, %107 : vector<2x200xf32>
    %c0_76 = arith.constant 0 : index
    %c0_77 = arith.constant 0 : index
    %109 = vector.load %arg11[%c0_76, %c0_77] : memref<200x20xf32, #tpu.memory_space<vmem>>, vector<200x20xf32>
    %cst_78 = arith.constant dense<0.000000e+00> : vector<2x20xf32>
    %110 = tpu.matmul %108, %109, %cst_78 {dimension_numbers = #tpu.dot_dimension_numbers<[1], [0], [0], [1], [0, 0, 1, 1], [], []>} : vector<2x200xf32>, vector<200x20xf32>, vector<2x20xf32> -> vector<2x20xf32>
    %c0_79 = arith.constant 0 : index
    %c0_80 = arith.constant 0 : index
    %111 = vector.load %arg12[%c0_79, %c0_80] : memref<1x20xf32, #tpu.memory_space<vmem>>, vector<1x20xf32>
    %112 = vector.broadcast %111 : vector<1x20xf32> to vector<2x20xf32>
    %113 = arith.addf %110, %112 : vector<2x20xf32>
    %c0_81 = arith.constant 0 : index
    %c0_82 = arith.constant 0 : index
    %114 = vector.load %arg13[%c0_81, %c0_82] : memref<2x20xf32, #tpu.memory_space<vmem>>, vector<2x20xf32>
    tpu.vector_store %arg13[%c0_81, %c0_82], %113 {strides = array<i32>} : memref<2x20xf32, #tpu.memory_space<vmem>>, vector<2x20xf32>,
    return
  }
}

</mosaic_0001>

<llo_original>
// kernel: tpu_custom_call.1
$region0: #{tpu_custom_call.1}
  #allocation0 [shape = 'u32[]', space=smem, size = 0x4, offset = 0x4, fixed_abs, tag = 'smem constant byte address 0x4 - core index']
  #allocation1 [shape = 'u32[144,128]{1,0:T(1,128)}', space=vmem, size = 0x12000, scoped, tag = 'internal scratch']
  #allocation2 [shape = 'f32[2,368]{1,0:T(2,128)}', space=vmem, size = 0xc00, scoped, tag = 'scratch operand']
  %s0 = inlined_call_operand.vmem [shape: f32[50,368], index: 0, kind: input, shape index: {}]
  %s1 = inlined_call_operand.vmem [shape: f32[40,50], index: 1, kind: input, shape index: {}]
  %s2 = inlined_call_operand.vmem [shape: f32[40,1], index: 2, kind: input, shape index: {}]
  %s3 = inlined_call_operand.vmem [shape: f32[40,1], index: 3, kind: input, shape index: {}]
  %s4 = inlined_call_operand.vmem [shape: f32[40,1], index: 4, kind: input, shape index: {}]
  %s5 = inlined_call_operand.vmem [shape: f32[16,40], index: 5, kind: input, shape index: {}]
  %s6 = inlined_call_operand.vmem [shape: f32[16,1], index: 6, kind: input, shape index: {}]
  %s7 = inlined_call_operand.vmem [shape: f32[16,1], index: 7, kind: input, shape index: {}]
  %s8 = inlined_call_operand.vmem [shape: f32[16,1], index: 8, kind: input, shape index: {}]
  %s9 = inlined_call_operand.vmem [shape: f32[368,200], index: 9, kind: input, shape index: {}]
  %s10 = inlined_call_operand.vmem [shape: f32[1,200], index: 10, kind: input, shape index: {}]
  %s11 = inlined_call_operand.vmem [shape: f32[200,20], index: 11, kind: input, shape index: {}]
  %s12 = inlined_call_operand.vmem [shape: f32[1,20], index: 12, kind: input, shape index: {}]
  %s13 = inlined_call_operand.hbm [shape: f32[2,20], index: 13, kind: output, shape index: {}]
  %s14 = sld [smem:[#allocation0]]
  $region62: #{tpu_custom_call.1} parent=0
    _
  %s16 = ssub.s32 1, %s14
  %s17 = scalar_select 0, %s16, %s14
  $region1: #{tpu_custom_call.1} parent=0
    #allocation3 [shape = 'u8[1024]{0}', space=vmem, size = 0x400, scoped, tag = 'output window, operand 0, single buffered']
    #allocation4 [shape = 's32[1]{0}', space=sflag, size = 0x4, scoped, tag = 'scoped memory for tpu_custom_call.1']
    %18 = vsyncpa [#allocation4], 0
    // Predicated region
    $region2: #{tpu_custom_call.1} parent=1 // pred_check
      _
    $region3: #{tpu_custom_call.1} parent=1 // pred_check_branch
      %20 = sbr.rel (0) target = $region5
    $region4: #{tpu_custom_call.1} parent=1 // pred_region
      _
    $region5: #{tpu_custom_call.1} parent=1 // pred_fallthru
      _
    // Predicated region
    $region6: #{tpu_custom_call.1} parent=1 // pred_check
      _
    $region7: #{tpu_custom_call.1} parent=1 // pred_check_branch
      %22 = sbr.rel (0) target = $region9
    $region8: #{tpu_custom_call.1} parent=1 // pred_region
      _
    $region9: #{tpu_custom_call.1} parent=1 // pred_fallthru
      _
    // Predicated region
    $region10: #{tpu_custom_call.1} parent=1 // pred_check
      _
    $region11: #{tpu_custom_call.1} parent=1 // pred_check_branch
      %24 = sbr.rel (0) target = $region13
    $region12: #{tpu_custom_call.1} parent=1 // pred_region
      _
    $region13: #{tpu_custom_call.1} parent=1 // pred_fallthru
      _
    // Predicated region
    $region14: #{tpu_custom_call.1} parent=1 // pred_check
      _
    $region15: #{tpu_custom_call.1} parent=1 // pred_check_branch
      %26 = sbr.rel (0) target = $region17
    $region16: #{tpu_custom_call.1} parent=1 // pred_region
      _
    $region17: #{tpu_custom_call.1} parent=1 // pred_fallthru
      _
    // Predicated region
    $region18: #{tpu_custom_call.1} parent=1 // pred_check
      _
    $region19: #{tpu_custom_call.1} parent=1 // pred_check_branch
      %28 = sbr.rel (0) target = $region21
    $region20: #{tpu_custom_call.1} parent=1 // pred_region
      _
    $region21: #{tpu_custom_call.1} parent=1 // pred_fallthru
      _
    // Predicated region
    $region22: #{tpu_custom_call.1} parent=1 // pred_check
      _
    $region23: #{tpu_custom_call.1} parent=1 // pred_check_branch
      %30 = sbr.rel (0) target = $region25
    $region24: #{tpu_custom_call.1} parent=1 // pred_region
      _
    $region25: #{tpu_custom_call.1} parent=1 // pred_fallthru
      _
    // Predicated region
    $region26: #{tpu_custom_call.1} parent=1 // pred_check
      _
    $region27: #{tpu_custom_call.1} parent=1 // pred_check_branch
      %32 = sbr.rel (0) target = $region29
    $region28: #{tpu_custom_call.1} parent=1 // pred_region
      _
    $region29: #{tpu_custom_call.1} parent=1 // pred_fallthru
      _
    // Predicated region
    $region30: #{tpu_custom_call.1} parent=1 // pred_check
      _
    $region31: #{tpu_custom_call.1} parent=1 // pred_check_branch
      %34 = sbr.rel (0) target = $region33
    $region32: #{tpu_custom_call.1} parent=1 // pred_region
      _
    $region33: #{tpu_custom_call.1} parent=1 // pred_fallthru
      _
    // Predicated region
    $region34: #{tpu_custom_call.1} parent=1 // pred_check
      _
    $region35: #{tpu_custom_call.1} parent=1 // pred_check_branch
      %36 = sbr.rel (0) target = $region37
    $region36: #{tpu_custom_call.1} parent=1 // pred_region
      _
    $region37: #{tpu_custom_call.1} parent=1 // pred_fallthru
      _
    // Predicated region
    $region38: #{tpu_custom_call.1} parent=1 // pred_check
      _
    $region39: #{tpu_custom_call.1} parent=1 // pred_check_branch
      %38 = sbr.rel (0) target = $region41
    $region40: #{tpu_custom_call.1} parent=1 // pred_region
      _
    $region41: #{tpu_custom_call.1} parent=1 // pred_fallthru
      _
    // Predicated region
    $region42: #{tpu_custom_call.1} parent=1 // pred_check
      _
    $region43: #{tpu_custom_call.1} parent=1 // pred_check_branch
      %40 = sbr.rel (0) target = $region45
    $region44: #{tpu_custom_call.1} parent=1 // pred_region
      _
    $region45: #{tpu_custom_call.1} parent=1 // pred_fallthru
      _
    // Predicated region
    $region46: #{tpu_custom_call.1} parent=1 // pred_check
      _
    $region47: #{tpu_custom_call.1} parent=1 // pred_check_branch
      %42 = sbr.rel (0) target = $region49
    $region48: #{tpu_custom_call.1} parent=1 // pred_region
      _
    $region49: #{tpu_custom_call.1} parent=1 // pred_fallthru
      _
    // Predicated region
    $region50: #{tpu_custom_call.1} parent=1 // pred_check
      _
    $region51: #{tpu_custom_call.1} parent=1 // pred_check_branch
      %44 = sbr.rel (0) target = $region53
    $region52: #{tpu_custom_call.1} parent=1 // pred_region
      _
    $region53: #{tpu_custom_call.1} parent=1 // pred_fallthru
      _
    %v45 = vld [vmem:[%s1] sm:$0xff]
    %v46 = vld [vmem:[%s1 + $0x8] sm:$0xff]
    %v47 = vld [vmem:[%s1 + $0x10] sm:$0xff]
    %v48 = vld [vmem:[%s1 + $0x18] sm:$0xff]
    %v49 = vld [vmem:[%s1 + $0x20] sm:$0xff]
    %v50 = vld [vmem:[%s0] sm:$0xff]
    %v51 = vld [vmem:[%s0 + $0x8] sm:$0xff]
    %v52 = vld [vmem:[%s0 + $0x10] sm:$0xff]
    %v53 = vld [vmem:[%s0 + $0x18] sm:$0xff]
    %v54 = vld [vmem:[%s0 + $0x20] sm:$0xff]
    %v55 = vld [vmem:[%s0 + $0x28] sm:$0xff]
    %v56 = vld [vmem:[%s0 + $0x30] sm:$0xff]
    %v57 = vld [vmem:[%s0 + $0x38] sm:$0xff]
    %v58 = vld [vmem:[%s0 + $0x40] sm:$0xff]
    %v59 = vld [vmem:[%s0 + $0x48] sm:$0xff]
    %v60 = vld [vmem:[%s0 + $0x50] sm:$0xff]
    %v61 = vld [vmem:[%s0 + $0x58] sm:$0xff]
    %v62 = vld [vmem:[%s0 + $0x60] sm:$0xff]
    %v63 = vld [vmem:[%s0 + $0x68] sm:$0xff]
    %v64 = vld [vmem:[%s0 + $0x70] sm:$0xff]
    %v65 = vld [vmem:[%s0 + $0x78] sm:$0xff]
    %v66 = vld [vmem:[%s0 + $0x80] sm:$0xff]
    %v67 = vld [vmem:[%s0 + $0x88] sm:$0xff]
    %v68 = vld [vmem:[%s0 + $0x90] sm:$0x3]
    %v69 = vld [vmem:[%s0 + $0x98] sm:$0x3]
    %v70 = vld [vmem:[%s0 + $0xa0] sm:$0x3]
    %vm71 = vcmask 408576
    %v73 = vsel %vm71, %v45, 0
    %v76 = vsel %vm71, %v46, 0
    %v79 = vsel %vm71, %v47, 0
    %v82 = vsel %vm71, %v48, 0
    %v85 = vsel %vm71, %v49, 0
    %vm87 = vcmask 1041408
    %v89 = vsel %vm87, %v68, 0
    %v92 = vsel %vm87, %v69, 0
    %v95 = vsel %vm87, %v70, 0
    %97 = vmatprep.subr.mxu0 %v51
    %98 = vmatpush1.msra.mxu0 %v50
    %99 = vmatprep.subr.mxu0 %v54
    %100 = vmatpush1.msra.mxu0 %v53
    %101 = vmatprep.subr.mxu0 %v57
    %102 = vmatpush1.msra.mxu0 %v56
    %103 = vmatprep.subr.mxu0 %v60
    %104 = vmatpush1.msra.mxu0 %v59
    %105 = vmatprep.subr.mxu0 %v63
    %106 = vmatpush1.msra.mxu0 %v62
    %107 = vmatprep.subr.mxu0 %v66
    %108 = vmatpush1.msra.mxu0 %v65
    %109 = vmatprep.subr.mxu0 %v92
    %110 = vmatpush1.msra.mxu0 %v89
    %111 = vmatprep.subr.mxu0 0.0
    %112 = vmatpush1.msra.mxu0 0.0
    %113 = vmatprep.subr.mxu0 0.0
    %114 = vmatpush1.msra.mxu0 0.0
    %115 = vmatprep.subr.mxu0 0.0
    %116 = vmatpush1.msra.mxu0 0.0
    %117 = vmatprep.subr.mxu0 0.0
    %118 = vmatpush1.msra.mxu0 0.0
    %119 = vmatprep.subr.mxu0 0.0
    %120 = vmatpush1.msra.mxu0 0.0
    %121 = vmatprep.subr.mxu0 0.0
    %122 = vmatpush1.msra.mxu0 0.0
    %123 = vmatprep.subr.mxu0 0.0
    %124 = vmatpush1.msra.mxu0 0.0
    %125 = vmatprep.subr.mxu0 0.0
    %126 = vmatpush1.msra.mxu0 0.0
    %127 = vmatprep.subr.mxu0 0.0
    %128 = vmatpush1.msra.mxu0 0.0
    %129 = vmatprep.subr.mxu0 0.0
    %130 = vmatpush1.msra.mxu0 0.0
    %131 = vmatprep.subr.mxu0 0.0
    %132 = vmatpush1.msra.mxu0 0.0
    %133 = vmatprep.subr.mxu0 0.0
    %134 = vmatpush1.msra.mxu0 0.0
    %135 = vmatprep.subr.mxu0 0.0
    %136 = vmatpush1.msra.mxu0 0.0
    %137 = vmatprep.subr.mxu0 0.0
    %138 = vmatpush1.msra.mxu0 0.0
    %139 = vmatprep.subr.mxu0 0.0
    %140 = vmatpush1.msra.mxu0 0.0
    %141 = vmatprep.subr.mxu0 0.0
    %142 = vmatpush1.msra.mxu0 0.0
    %143 = vmatprep.subr.mxu0 0.0
    %144 = vmatpush1.msra.mxu0 0.0
    %145 = vmatprep.subr.mxu0 0.0
    %146 = vmatpush1.msra.mxu0 0.0
    %147 = vmatprep.subr.mxu0 0.0
    %148 = vmatpush1.msra.mxu0 0.0
    %149 = vmatprep.subr.mxu0 0.0
    %150 = vmatpush1.msra.mxu0 0.0
    %151 = vmatprep.subr.mxu0 0.0
    %152 = vmatpush1.msra.mxu0 0.0
    %153 = vmatprep.subr.mxu0 0.0
    %154 = vmatpush1.msra.mxu0 0.0
    %155 = vmatprep.subr.mxu0 0.0
    %156 = vmatpush1.msra.mxu0 0.0
    %157 = vmatprep.subr.mxu0 0.0
    %158 = vmatpush1.msra.mxu0 0.0
    %159 = vmatprep.subr.mxu0 0.0
    %160 = vmatpush1.msra.mxu0 0.0
    %161 = vmatprep.mubr.f32.mxu0 0.0
    %162 = vmatmul.mubr.f32.gmra.mrb[0].mxu0 %v73
    %v163 = vpop.f32.mrb[0].mxu0
    %v164 = vadd.f32 0.0, %v163
    %v165 = vpop.f32.mrb[0].mxu0
    %v166 = vadd.f32 0.0, %v165
    %167 = vmatprep.mubr.f32.mxu0 0.0
    %168 = vmatmul.mubr.f32.gmra.mrb[0].mxu0 %v76
    %v169 = vpop.f32.mrb[0].mxu0
    %v170 = vadd.f32 0.0, %v169
    %v171 = vpop.f32.mrb[0].mxu0
    %v172 = vadd.f32 0.0, %v171
    %173 = vmatprep.mubr.f32.mxu0 0.0
    %174 = vmatmul.mubr.f32.gmra.mrb[0].mxu0 %v79
    %v175 = vpop.f32.mrb[0].mxu0
    %v176 = vadd.f32 0.0, %v175
    %v177 = vpop.f32.mrb[0].mxu0
    %v178 = vadd.f32 0.0, %v177
    %179 = vmatprep.mubr.f32.mxu0 0.0
    %180 = vmatmul.mubr.f32.gmra.mrb[0].mxu0 %v82
    %v181 = vpop.f32.mrb[0].mxu0
    %v182 = vadd.f32 0.0, %v181
    %v183 = vpop.f32.mrb[0].mxu0
    %v184 = vadd.f32 0.0, %v183
    %185 = vmatprep.mubr.f32.mxu0 0.0
    %186 = vmatmul.mubr.f32.gmra.mrb[0].mxu0 %v85
    %v187 = vpop.f32.mrb[0].mxu0
    %v188 = vadd.f32 0.0, %v187
    %v189 = vpop.f32.mrb[0].mxu0
    %v190 = vadd.f32 0.0, %v189
    %191 = vdwg.mxu0
    %192 = vmatprep.subr.mxu0 0.0
    %193 = vmatpush1.msra.mxu0 %v52
    %194 = vmatprep.subr.mxu0 0.0
    %195 = vmatpush1.msra.mxu0 %v55
    %196 = vmatprep.subr.mxu0 0.0
    %197 = vmatpush1.msra.mxu0 %v58
    %198 = vmatprep.subr.mxu0 0.0
    %199 = vmatpush1.msra.mxu0 %v61
    %200 = vmatprep.subr.mxu0 0.0
    %201 = vmatpush1.msra.mxu0 %v64
    %202 = vmatprep.subr.mxu0 0.0
    %203 = vmatpush1.msra.mxu0 %v67
    %204 = vmatprep.subr.mxu0 0.0
    %205 = vmatpush1.msra.mxu0 %v95
    %206 = vmatprep.subr.mxu0 0.0
    %207 = vmatpush1.msra.mxu0 0.0
    %208 = vmatprep.subr.mxu0 0.0
    %209 = vmatpush1.msra.mxu0 0.0
    %210 = vmatprep.subr.mxu0 0.0
    %211 = vmatpush1.msra.mxu0 0.0
    %212 = vmatprep.subr.mxu0 0.0
    %213 = vmatpush1.msra.mxu0 0.0
    %214 = vmatprep.subr.mxu0 0.0
    %215 = vmatpush1.msra.mxu0 0.0
    %216 = vmatprep.subr.mxu0 0.0
    %217 = vmatpush1.msra.mxu0 0.0
    %218 = vmatprep.subr.mxu0 0.0
    %219 = vmatpush1.msra.mxu0 0.0
    %220 = vmatprep.subr.mxu0 0.0
    %221 = vmatpush1.msra.mxu0 0.0
    %222 = vmatprep.subr.mxu0 0.0
    %223 = vmatpush1.msra.mxu0 0.0
    %224 = vmatprep.subr.mxu0 0.0
    %225 = vmatpush1.msra.mxu0 0.0
    %226 = vmatprep.subr.mxu0 0.0
    %227 = vmatpush1.msra.mxu0 0.0
    %228 = vmatprep.subr.mxu0 0.0
    %229 = vmatpush1.msra.mxu0 0.0
    %230 = vmatprep.subr.mxu0 0.0
    %231 = vmatpush1.msra.mxu0 0.0
    %232 = vmatprep.subr.mxu0 0.0
    %233 = vmatpush1.msra.mxu0 0.0
    %234 = vmatprep.subr.mxu0 0.0
    %235 = vmatpush1.msra.mxu0 0.0
    %236 = vmatprep.subr.mxu0 0.0
    %237 = vmatpush1.msra.mxu0 0.0
    %238 = vmatprep.subr.mxu0 0.0
    %239 = vmatpush1.msra.mxu0 0.0
    %240 = vmatprep.subr.mxu0 0.0
    %241 = vmatpush1.msra.mxu0 0.0
    %242 = vmatprep.subr.mxu0 0.0
    %243 = vmatpush1.msra.mxu0 0.0
    %244 = vmatprep.subr.mxu0 0.0
    %245 = vmatpush1.msra.mxu0 0.0
    %246 = vmatprep.subr.mxu0 0.0
    %247 = vmatpush1.msra.mxu0 0.0
    %248 = vmatprep.subr.mxu0 0.0
    %249 = vmatpush1.msra.mxu0 0.0
    %250 = vmatprep.subr.mxu0 0.0
    %251 = vmatpush1.msra.mxu0 0.0
    %252 = vmatprep.subr.mxu0 0.0
    %253 = vmatpush1.msra.mxu0 0.0
    %254 = vmatprep.subr.mxu0 0.0
    %255 = vmatpush1.msra.mxu0 0.0
    %256 = vmatprep.mubr.f32.mxu0 0.0
    %257 = vmatmul.mubr.f32.gmra.mrb[0].mxu0 %v73
    %v258 = vpop.f32.mrb[0].mxu0
    %v259 = vadd.f32 0.0, %v258
    %v260 = vpop.f32.mrb[0].mxu0
    %261 = vmatprep.mubr.f32.mxu0 0.0
    %262 = vmatmul.mubr.f32.gmra.mrb[0].mxu0 %v76
    %v263 = vpop.f32.mrb[0].mxu0
    %v264 = vadd.f32 0.0, %v263
    %v265 = vpop.f32.mrb[0].mxu0
    %266 = vmatprep.mubr.f32.mxu0 0.0
    %267 = vmatmul.mubr.f32.gmra.mrb[0].mxu0 %v79
    %v268 = vpop.f32.mrb[0].mxu0
    %v269 = vadd.f32 0.0, %v268
    %v270 = vpop.f32.mrb[0].mxu0
    %271 = vmatprep.mubr.f32.mxu0 0.0
    %272 = vmatmul.mubr.f32.gmra.mrb[0].mxu0 %v82
    %v273 = vpop.f32.mrb[0].mxu0
    %v274 = vadd.f32 0.0, %v273
    %v275 = vpop.f32.mrb[0].mxu0
    %276 = vmatprep.mubr.f32.mxu0 0.0
    %277 = vmatmul.mubr.f32.gmra.mrb[0].mxu0 %v85
    %v278 = vpop.f32.mrb[0].mxu0
    %v279 = vadd.f32 0.0, %v278
    %v280 = vpop.f32.mrb[0].mxu0
    %281 = vdwg.mxu0
    %292 = vrot.lane.b32.xlu0 %v164, 36
    %v293 = vpop.permute.xlu0 %292
    %294 = vrot.lane.b32.xlu0 %v166, 36
    %v295 = vpop.permute.xlu0 %294
    %296 = vrot.lane.b32.xlu0 %v170, 36
    %v297 = vpop.permute.xlu0 %296
    %298 = vrot.lane.b32.xlu0 %v172, 36
    %v299 = vpop.permute.xlu0 %298
    %300 = vrot.lane.b32.xlu0 %v176, 36
    %v301 = vpop.permute.xlu0 %300
    %302 = vrot.lane.b32.xlu0 %v178, 36
    %v303 = vpop.permute.xlu0 %302
    %304 = vrot.lane.b32.xlu0 %v182, 36
    %v305 = vpop.permute.xlu0 %304
    %306 = vrot.lane.b32.xlu0 %v184, 36
    %v307 = vpop.permute.xlu0 %306
    %308 = vrot.lane.b32.xlu0 %v188, 36
    %v309 = vpop.permute.xlu0 %308
    %310 = vrot.lane.b32.xlu0 %v190, 36
    %v311 = vpop.permute.xlu0 %310
    %vm312 = vcmask 293888
    %v313 = vsel %vm312, %v293, %v295
    %v314 = vsel %vm312, %v297, %v299
    %v315 = vsel %vm312, %v301, %v303
    %v316 = vsel %vm312, %v305, %v307
    %v317 = vsel %vm312, %v309, %v311
    %v323 = vmax.f32 %v164, %v313
    %v324 = vmax.f32 %v170, %v314
    %v325 = vmax.f32 %v176, %v315
    %v326 = vmax.f32 %v182, %v316
    %v327 = vmax.f32 %v188, %v317
    %333 = vrot.lane.b32.xlu0 %v259, 36
    %v334 = vpop.permute.xlu0 %333
    %335 = vrot.lane.b32.xlu0 %v264, 36
    %v336 = vpop.permute.xlu0 %335
    %337 = vrot.lane.b32.xlu0 %v269, 36
    %v338 = vpop.permute.xlu0 %337
    %339 = vrot.lane.b32.xlu0 %v274, 36
    %v340 = vpop.permute.xlu0 %339
    %341 = vrot.lane.b32.xlu0 %v279, 36
    %v342 = vpop.permute.xlu0 %341
    %v348 = vmax.f32 %v166, %v334
    %v349 = vmax.f32 %v259, %v334
    %v350 = vmax.f32 %v172, %v336
    %v351 = vmax.f32 %v264, %v336
    %v352 = vmax.f32 %v178, %v338
    %v353 = vmax.f32 %v269, %v338
    %v354 = vmax.f32 %v184, %v340
    %v355 = vmax.f32 %v274, %v340
    %v356 = vmax.f32 %v190, %v342
    %v357 = vmax.f32 %v279, %v342
    %368 = vrot.lane.b32.xlu0 %v348, 72
    %v369 = vpop.permute.xlu0 %368
    %370 = vrot.lane.b32.xlu0 %v349, 72
    %v371 = vpop.permute.xlu0 %370
    %372 = vrot.lane.b32.xlu0 %v350, 72
    %v373 = vpop.permute.xlu0 %372
    %374 = vrot.lane.b32.xlu0 %v351, 72
    %v375 = vpop.permute.xlu0 %374
    %376 = vrot.lane.b32.xlu0 %v352, 72
    %v377 = vpop.permute.xlu0 %376
    %378 = vrot.lane.b32.xlu0 %v353, 72
    %v379 = vpop.permute.xlu0 %378
    %380 = vrot.lane.b32.xlu0 %v354, 72
    %v381 = vpop.permute.xlu0 %380
    %382 = vrot.lane.b32.xlu0 %v355, 72
    %v383 = vpop.permute.xlu0 %382
    %384 = vrot.lane.b32.xlu0 %v356, 72
    %v385 = vpop.permute.xlu0 %384
    %386 = vrot.lane.b32.xlu0 %v357, 72
    %v387 = vpop.permute.xlu0 %386
    %vm388 = vcmask 588800
    %v389 = vsel %vm388, %v369, %v371
    %v390 = vsel %vm388, %v373, %v375
    %v391 = vsel %vm388, %v377, %v379
    %v392 = vsel %vm388, %v381, %v383
    %v393 = vsel %vm388, %v385, %v387
    %v399 = vmax.f32 %v323, %v389
    %v400 = vmax.f32 %v324, %v390
    %v401 = vmax.f32 %v325, %v391
    %v402 = vmax.f32 %v326, %v392
    %v403 = vmax.f32 %v327, %v393
    %v404 = vld [vmem:[%s2] sm:$0xff]
    %v405 = vld [vmem:[%s2 + $0x8] sm:$0xff]
    %v406 = vld [vmem:[%s2 + $0x10] sm:$0xff]
    %v407 = vld [vmem:[%s2 + $0x18] sm:$0xff]
    %v408 = vld [vmem:[%s2 + $0x20] sm:$0xff]
    %410 = vset.pattern.permute.xlu0 0
    %411 = vperm.xlu0 %410, %v404
    %v412 = vpop.permute.xlu0 %411
    %415 = vset.pattern.permute.xlu0 0
    %416 = vperm.xlu0 %415, %v405
    %v417 = vpop.permute.xlu0 %416
    %420 = vset.pattern.permute.xlu0 0
    %421 = vperm.xlu0 %420, %v406
    %v422 = vpop.permute.xlu0 %421
    %425 = vset.pattern.permute.xlu0 0
    %426 = vperm.xlu0 %425, %v407
    %v427 = vpop.permute.xlu0 %426
    %430 = vset.pattern.permute.xlu0 0
    %431 = vperm.xlu0 %430, %v408
    %v432 = vpop.permute.xlu0 %431
    %v434 = vadd.f32 %v399, %v412
    %v435 = vadd.f32 %v400, %v417
    %v436 = vadd.f32 %v401, %v422
    %v437 = vadd.f32 %v402, %v427
    %v438 = vadd.f32 %v403, %v432
    %v439 = vmax.f32 %v434, 0.0
    %v440 = vmax.f32 %v435, 0.0
    %v441 = vmax.f32 %v436, 0.0
    %v442 = vmax.f32 %v437, 0.0
    %v443 = vmax.f32 %v438, 0.0
    %v444 = vld [vmem:[%s3] sm:$0xff]
    %v445 = vld [vmem:[%s3 + $0x8] sm:$0xff]
    %v446 = vld [vmem:[%s3 + $0x10] sm:$0xff]
    %v447 = vld [vmem:[%s3 + $0x18] sm:$0xff]
    %v448 = vld [vmem:[%s3 + $0x20] sm:$0xff]
    %450 = vset.pattern.permute.xlu0 0
    %451 = vperm.xlu0 %450, %v444
    %v452 = vpop.permute.xlu0 %451
    %455 = vset.pattern.permute.xlu0 0
    %456 = vperm.xlu0 %455, %v445
    %v457 = vpop.permute.xlu0 %456
    %460 = vset.pattern.permute.xlu0 0
    %461 = vperm.xlu0 %460, %v446
    %v462 = vpop.permute.xlu0 %461
    %465 = vset.pattern.permute.xlu0 0
    %466 = vperm.xlu0 %465, %v447
    %v467 = vpop.permute.xlu0 %466
    %470 = vset.pattern.permute.xlu0 0
    %471 = vperm.xlu0 %470, %v448
    %v472 = vpop.permute.xlu0 %471
    %v474 = vmul.f32 %v439, %v452
    %v475 = vmul.f32 %v440, %v457
    %v476 = vmul.f32 %v441, %v462
    %v477 = vmul.f32 %v442, %v467
    %v478 = vmul.f32 %v443, %v472
    %v479 = vld [vmem:[%s4] sm:$0xff]
    %v480 = vld [vmem:[%s4 + $0x8] sm:$0xff]
    %v481 = vld [vmem:[%s4 + $0x10] sm:$0xff]
    %v482 = vld [vmem:[%s4 + $0x18] sm:$0xff]
    %v483 = vld [vmem:[%s4 + $0x20] sm:$0xff]
    %485 = vset.pattern.permute.xlu0 0
    %486 = vperm.xlu0 %485, %v479
    %v487 = vpop.permute.xlu0 %486
    %490 = vset.pattern.permute.xlu0 0
    %491 = vperm.xlu0 %490, %v480
    %v492 = vpop.permute.xlu0 %491
    %495 = vset.pattern.permute.xlu0 0
    %496 = vperm.xlu0 %495, %v481
    %v497 = vpop.permute.xlu0 %496
    %500 = vset.pattern.permute.xlu0 0
    %501 = vperm.xlu0 %500, %v482
    %v502 = vpop.permute.xlu0 %501
    %505 = vset.pattern.permute.xlu0 0
    %506 = vperm.xlu0 %505, %v483
    %v507 = vpop.permute.xlu0 %506
    %v509 = vadd.f32 %v474, %v487
    %v510 = vadd.f32 %v475, %v492
    %v511 = vadd.f32 %v476, %v497
    %v512 = vadd.f32 %v477, %v502
    %v513 = vadd.f32 %v478, %v507
    %v514 = vld [vmem:[%s5] sm:$0xff]
    %v515 = vld [vmem:[%s5 + $0x8] sm:$0xff]
    %vm516 = vcmask 326656
    %v518 = vsel %vm516, %v514, 0
    %v521 = vsel %vm516, %v515, 0
    %523 = vmatprep.subr.mxu0 0.0
    %524 = vmatpush1.msra.mxu0 %v509
    %525 = vmatprep.subr.mxu0 0.0
    %526 = vmatpush1.msra.mxu0 %v510
    %527 = vmatprep.subr.mxu0 0.0
    %528 = vmatpush1.msra.mxu0 %v511
    %529 = vmatprep.subr.mxu0 0.0
    %530 = vmatpush1.msra.mxu0 %v512
    %531 = vmatprep.subr.mxu0 0.0
    %532 = vmatpush1.msra.mxu0 %v513
    %533 = vmatprep.subr.mxu0 0.0
    %534 = vmatpush1.msra.mxu0 0.0
    %535 = vmatprep.subr.mxu0 0.0
    %536 = vmatpush1.msra.mxu0 0.0
    %537 = vmatprep.subr.mxu0 0.0
    %538 = vmatpush1.msra.mxu0 0.0
    %539 = vmatprep.subr.mxu0 0.0
    %540 = vmatpush1.msra.mxu0 0.0
    %541 = vmatprep.subr.mxu0 0.0
    %542 = vmatpush1.msra.mxu0 0.0
    %543 = vmatprep.subr.mxu0 0.0
    %544 = vmatpush1.msra.mxu0 0.0
    %545 = vmatprep.subr.mxu0 0.0
    %546 = vmatpush1.msra.mxu0 0.0
    %547 = vmatprep.subr.mxu0 0.0
    %548 = vmatpush1.msra.mxu0 0.0
    %549 = vmatprep.subr.mxu0 0.0
    %550 = vmatpush1.msra.mxu0 0.0
    %551 = vmatprep.subr.mxu0 0.0
    %552 = vmatpush1.msra.mxu0 0.0
    %553 = vmatprep.subr.mxu0 0.0
    %554 = vmatpush1.msra.mxu0 0.0
    %555 = vmatprep.subr.mxu0 0.0
    %556 = vmatpush1.msra.mxu0 0.0
    %557 = vmatprep.subr.mxu0 0.0
    %558 = vmatpush1.msra.mxu0 0.0
    %559 = vmatprep.subr.mxu0 0.0
    %560 = vmatpush1.msra.mxu0 0.0
    %561 = vmatprep.subr.mxu0 0.0
    %562 = vmatpush1.msra.mxu0 0.0
    %563 = vmatprep.subr.mxu0 0.0
    %564 = vmatpush1.msra.mxu0 0.0
    %565 = vmatprep.subr.mxu0 0.0
    %566 = vmatpush1.msra.mxu0 0.0
    %567 = vmatprep.subr.mxu0 0.0
    %568 = vmatpush1.msra.mxu0 0.0
    %569 = vmatprep.subr.mxu0 0.0
    %570 = vmatpush1.msra.mxu0 0.0
    %571 = vmatprep.subr.mxu0 0.0
    %572 = vmatpush1.msra.mxu0 0.0
    %573 = vmatprep.subr.mxu0 0.0
    %574 = vmatpush1.msra.mxu0 0.0
    %575 = vmatprep.subr.mxu0 0.0
    %576 = vmatpush1.msra.mxu0 0.0
    %577 = vmatprep.subr.mxu0 0.0
    %578 = vmatpush1.msra.mxu0 0.0
    %579 = vmatprep.subr.mxu0 0.0
    %580 = vmatpush1.msra.mxu0 0.0
    %581 = vmatprep.subr.mxu0 0.0
    %582 = vmatpush1.msra.mxu0 0.0
    %583 = vmatprep.subr.mxu0 0.0
    %584 = vmatpush1.msra.mxu0 0.0
    %585 = vmatprep.subr.mxu0 0.0
    %586 = vmatpush1.msra.mxu0 0.0
    %587 = vmatprep.mubr.f32.mxu0 0.0
    %588 = vmatmul.mubr.f32.gmra.mrb[0].mxu0 %v518
    %v589 = vpop.f32.mrb[0].mxu0
    %v590 = vadd.f32 0.0, %v589
    %v591 = vpop.f32.mrb[0].mxu0
    %592 = vmatprep.mubr.f32.mxu0 0.0
    %593 = vmatmul.mubr.f32.gmra.mrb[0].mxu0 %v521
    %v594 = vpop.f32.mrb[0].mxu0
    %v595 = vadd.f32 0.0, %v594
    %v596 = vpop.f32.mrb[0].mxu0
    %597 = vdwg.mxu0
    %600 = vrot.lane.b32.xlu0 %v590, 82
    %v601 = vpop.permute.xlu0 %600
    %602 = vrot.lane.b32.xlu0 %v595, 82
    %v603 = vpop.permute.xlu0 %602
    %v606 = vmax.f32 %v590, %v601
    %v607 = vmax.f32 %v595, %v603
    %v608 = vld [vmem:[%s6] sm:$0xff]
    %v609 = vld [vmem:[%s6 + $0x8] sm:$0xff]
    %611 = vset.pattern.permute.xlu0 0
    %612 = vperm.xlu0 %611, %v608
    %v613 = vpop.permute.xlu0 %612
    %616 = vset.pattern.permute.xlu0 0
    %617 = vperm.xlu0 %616, %v609
    %v618 = vpop.permute.xlu0 %617
    %v620 = vadd.f32 %v606, %v613
    %v621 = vadd.f32 %v607, %v618
    %v622 = vmax.f32 %v620, 0.0
    %v623 = vmax.f32 %v621, 0.0
    %v624 = vld [vmem:[%s7] sm:$0xff]
    %v625 = vld [vmem:[%s7 + $0x8] sm:$0xff]
    %627 = vset.pattern.permute.xlu0 0
    %628 = vperm.xlu0 %627, %v624
    %v629 = vpop.permute.xlu0 %628
    %632 = vset.pattern.permute.xlu0 0
    %633 = vperm.xlu0 %632, %v625
    %v634 = vpop.permute.xlu0 %633
    %v636 = vmul.f32 %v622, %v629
    %v637 = vmul.f32 %v623, %v634
    %v638 = vld [vmem:[%s8] sm:$0xff]
    %v639 = vld [vmem:[%s8 + $0x8] sm:$0xff]
    %641 = vset.pattern.permute.xlu0 0
    %642 = vperm.xlu0 %641, %v638
    %v643 = vpop.permute.xlu0 %642
    %646 = vset.pattern.permute.xlu0 0
    %647 = vperm.xlu0 %646, %v639
    %v648 = vpop.permute.xlu0 %647
    %v650 = vadd.f32 %v636, %v643
    %v651 = vadd.f32 %v637, %v648
    %vm652 = vcmask 180224
    %653 = vst.msk [vmem:[#allocation2] sm:$0x1] %vm652, %v650
    %v656 = vunpack.c.l.s4 1983009808
    %v657 = vunpack.c.0.s8 %v656
    %v658 = vlaneseq
    %v659 = vshrl.u32 %v658, 7
    %v660 = vsub.s32 %v657, %v659
    %v661 = vrot.slane %v650, %v660
    %v662 = vrot.slane %v661, 7
    %v663 = vrot.slane %v662, 2
    %664 = vrot.lane.b32.xlu0 %v663, 23
    %v665 = vpop.permute.xlu0 %664
    %vm667 = vcmask 368824
    %668 = vst.msk [vmem:[#allocation2] sm:$0x1] %vm667, %v665
    %v669 = vcombine.high %v661, %v661
    %670 = vrot.lane.b32.xlu0 %v669, 46
    %v671 = vpop.permute.xlu0 %670
    %vm673 = vcmask 557424
    %674 = vst.msk [vmem:[#allocation2] sm:$0x1] %vm673, %v671
    %v675 = vrot.slane %v669, 7
    %v676 = vrot.slane %v675, 2
    %677 = vrot.lane.b32.xlu0 %v676, 69
    %v678 = vpop.permute.xlu0 %677
    %vm680 = vcmask 746024
    %681 = vst.msk [vmem:[#allocation2] sm:$0x1] %vm680, %v678
    %v682 = vcombine.high %v650, %v650
    %v684 = vunpack.c.l.s4 1983009808
    %v685 = vunpack.c.0.s8 %v684
    %v686 = vlaneseq
    %v687 = vshrl.u32 %v686, 7
    %v688 = vsub.s32 %v685, %v687
    %v689 = vrot.slane %v682, %v688
    %690 = vrot.lane.b32.xlu0 %v689, 92
    %v691 = vpop.permute.xlu0 %690
    %vm693 = vcmask 934624
    %694 = vst.msk [vmem:[#allocation2] sm:$0x1] %vm693, %v691
    %v695 = vrot.slane %v689, 7
    %v696 = vrot.slane %v695, 2
    %697 = vrot.lane.b32.xlu0 %v696, 115
    %v698 = vpop.permute.xlu0 %697
    %v699 = vrot.slane %v698, 6
    %vm700 = vcmask 941056
    %v701 = vsel %vm700, %v699, %v698
    %vm703 = vcmask 1041304
    %vm704 = vcmask 75778
    %vm705 = vmor %vm704, %vm703
    %706 = vst.msk [vmem:[#allocation2] sm:$0x5] %vm705, %v701
    %v707 = vcombine.high %v689, %v689
    %708 = vrot.lane.b32.xlu0 %v707, 10
    %v709 = vpop.permute.xlu0 %708
    %vm711 = vcmask 262224
    %712 = vst.msk [vmem:[#allocation2 + $0x2] sm:$0x1] %vm711, %v709
    %v713 = vrot.slane %v707, 7
    %v714 = vrot.slane %v713, 2
    %715 = vrot.lane.b32.xlu0 %v714, 33
    %v716 = vpop.permute.xlu0 %715
    %vm718 = vcmask 450824
    %719 = vst.msk [vmem:[#allocation2 + $0x2] sm:$0x1] %vm718, %v716
    %v722 = vunpack.c.l.s4 1983009808
    %v723 = vunpack.c.0.s8 %v722
    %v724 = vlaneseq
    %v725 = vshrl.u32 %v724, 7
    %v726 = vsub.s32 %v723, %v725
    %v727 = vrot.slane %v651, %v726
    %728 = vrot.lane.b32.xlu0 %v727, 56
    %v729 = vpop.permute.xlu0 %728
    %vm731 = vcmask 639424
    %732 = vst.msk [vmem:[#allocation2 + $0x2] sm:$0x1] %vm731, %v729
    %v733 = vrot.slane %v727, 7
    %v734 = vrot.slane %v733, 2
    %735 = vrot.lane.b32.xlu0 %v734, 79
    %v736 = vpop.permute.xlu0 %735
    %vm738 = vcmask 828024
    %739 = vst.msk [vmem:[#allocation2 + $0x2] sm:$0x1] %vm738, %v736
    %v740 = vcombine.high %v727, %v727
    %741 = vrot.lane.b32.xlu0 %v740, 102
    %v742 = vpop.permute.xlu0 %741
    %vm744 = vcmask 1016624
    %745 = vst.msk [vmem:[#allocation2 + $0x2] sm:$0x1] %vm744, %v742
    %v746 = vrot.slane %v740, 7
    %v747 = vrot.slane %v746, 2
    %748 = vrot.lane.b32.xlu0 %v747, 125
    %v749 = vpop.permute.xlu0 %748
    %v750 = vrot.slane %v749, 6
    %vm751 = vcmask 1022976
    %v752 = vsel %vm751, %v750, %v749
    %vm754 = vcmask 1041384
    %vm755 = vcmask 157698
    %vm756 = vmor %vm755, %vm754
    %757 = vst.msk [vmem:[#allocation2 + $0x2] sm:$0x5] %vm756, %v752
    %v758 = vcombine.high %v651, %v651
    %v760 = vunpack.c.l.s4 1983009808
    %v761 = vunpack.c.0.s8 %v760
    %v762 = vlaneseq
    %v763 = vshrl.u32 %v762, 7
    %v764 = vsub.s32 %v761, %v763
    %v765 = vrot.slane %v758, %v764
    %766 = vrot.lane.b32.xlu0 %v765, 20
    %v767 = vpop.permute.xlu0 %766
    %vm769 = vcmask 344224
    %770 = vst.msk [vmem:[#allocation2 + $0x4] sm:$0x1] %vm769, %v767
    %v771 = vrot.slane %v765, 7
    %v772 = vrot.slane %v771, 2
    %773 = vrot.lane.b32.xlu0 %v772, 43
    %v774 = vpop.permute.xlu0 %773
    %vm776 = vcmask 532824
    %777 = vst.msk [vmem:[#allocation2 + $0x4] sm:$0x1] %vm776, %v774
    %v778 = vcombine.high %v765, %v765
    %779 = vrot.lane.b32.xlu0 %v778, 66
    %v780 = vpop.permute.xlu0 %779
    %vm782 = vcmask 721424
    %783 = vst.msk [vmem:[#allocation2 + $0x4] sm:$0x1] %vm782, %v780
    %v784 = vrot.slane %v778, 7
    %v785 = vrot.slane %v784, 2
    %786 = vrot.lane.b32.xlu0 %v785, 89
    %v787 = vpop.permute.xlu0 %786
    %vm789 = vcmask 910024
    %790 = vst.msk [vmem:[#allocation2 + $0x4] sm:$0x1] %vm789, %v787
    %791 = vrot.lane.b32.xlu0 %v661, 105
    %v792 = vpop.permute.xlu0 %791
    %794 = vst.msk [vmem:[#allocation2 + $0x1] sm:$0x1] %vm652, %v792
    %796 = vst.msk [vmem:[#allocation2 + $0x1] sm:$0x1] %vm667, %v663
    %797 = vrot.lane.b32.xlu0 %v669, 23
    %v798 = vpop.permute.xlu0 %797
    %800 = vst.msk [vmem:[#allocation2 + $0x1] sm:$0x1] %vm673, %v798
    %801 = vrot.lane.b32.xlu0 %v676, 46
    %v802 = vpop.permute.xlu0 %801
    %804 = vst.msk [vmem:[#allocation2 + $0x1] sm:$0x1] %vm680, %v802
    %805 = vrot.lane.b32.xlu0 %v689, 69
    %v806 = vpop.permute.xlu0 %805
    %808 = vst.msk [vmem:[#allocation2 + $0x1] sm:$0x1] %vm693, %v806
    %809 = vrot.lane.b32.xlu0 %v696, 92
    %v810 = vpop.permute.xlu0 %809
    %v811 = vrot.slane %v810, 6
    %vm812 = vcmask 752640
    %v813 = vsel %vm812, %v811, %v810
    %815 = vst.msk [vmem:[#allocation2 + $0x1] sm:$0x5] %vm705, %v813
    %816 = vrot.lane.b32.xlu0 %v707, 115
    %v817 = vpop.permute.xlu0 %816
    %819 = vst.msk [vmem:[#allocation2 + $0x3] sm:$0x1] %vm711, %v817
    %820 = vrot.lane.b32.xlu0 %v714, 10
    %v821 = vpop.permute.xlu0 %820
    %823 = vst.msk [vmem:[#allocation2 + $0x3] sm:$0x1] %vm718, %v821
    %824 = vrot.lane.b32.xlu0 %v727, 33
    %v825 = vpop.permute.xlu0 %824
    %827 = vst.msk [vmem:[#allocation2 + $0x3] sm:$0x1] %vm731, %v825
    %828 = vrot.lane.b32.xlu0 %v734, 56
    %v829 = vpop.permute.xlu0 %828
    %831 = vst.msk [vmem:[#allocation2 + $0x3] sm:$0x1] %vm738, %v829
    %832 = vrot.lane.b32.xlu0 %v740, 79
    %v833 = vpop.permute.xlu0 %832
    %835 = vst.msk [vmem:[#allocation2 + $0x3] sm:$0x1] %vm744, %v833
    %836 = vrot.lane.b32.xlu0 %v747, 102
    %v837 = vpop.permute.xlu0 %836
    %v838 = vrot.slane %v837, 6
    %vm839 = vcmask 834560
    %v840 = vsel %vm839, %v838, %v837
    %842 = vst.msk [vmem:[#allocation2 + $0x3] sm:$0x5] %vm756, %v840
    %843 = vrot.lane.b32.xlu0 %v765, 125
    %v844 = vpop.permute.xlu0 %843
    %846 = vst.msk [vmem:[#allocation2 + $0x5] sm:$0x1] %vm769, %v844
    %847 = vrot.lane.b32.xlu0 %v772, 20
    %v848 = vpop.permute.xlu0 %847
    %850 = vst.msk [vmem:[#allocation2 + $0x5] sm:$0x1] %vm776, %v848
    %851 = vrot.lane.b32.xlu0 %v778, 43
    %v852 = vpop.permute.xlu0 %851
    %854 = vst.msk [vmem:[#allocation2 + $0x5] sm:$0x1] %vm782, %v852
    %855 = vrot.lane.b32.xlu0 %v785, 66
    %v856 = vpop.permute.xlu0 %855
    %858 = vst.msk [vmem:[#allocation2 + $0x5] sm:$0x1] %vm789, %v856
    %v859 = vld [vmem:[#allocation2] sm:$0x3f]
    %v860 = vld [vmem:[%s9] sm:$0xff]
    %v861 = vld [vmem:[%s9 + $0x8] sm:$0xff]
    %v862 = vld [vmem:[%s9 + $0x10] sm:$0xff]
    %v863 = vld [vmem:[%s9 + $0x18] sm:$0xff]
    %v864 = vld [vmem:[%s9 + $0x20] sm:$0xff]
    %v865 = vld [vmem:[%s9 + $0x28] sm:$0xff]
    %v866 = vld [vmem:[%s9 + $0x30] sm:$0xff]
    %v867 = vld [vmem:[%s9 + $0x38] sm:$0xff]
    %v868 = vld [vmem:[%s9 + $0x40] sm:$0xff]
    %v869 = vld [vmem:[%s9 + $0x48] sm:$0xff]
    %v870 = vld [vmem:[%s9 + $0x50] sm:$0xff]
    %v871 = vld [vmem:[%s9 + $0x58] sm:$0xff]
    %v872 = vld [vmem:[%s9 + $0x60] sm:$0xff]
    %v873 = vld [vmem:[%s9 + $0x68] sm:$0xff]
    %v874 = vld [vmem:[%s9 + $0x70] sm:$0xff]
    %v875 = vld [vmem:[%s9 + $0x78] sm:$0xff]
    %v876 = vld [vmem:[%s9 + $0x80] sm:$0xff]
    %v877 = vld [vmem:[%s9 + $0x88] sm:$0xff]
    %v878 = vld [vmem:[%s9 + $0x90] sm:$0xff]
    %v879 = vld [vmem:[%s9 + $0x98] sm:$0xff]
    %v880 = vld [vmem:[%s9 + $0xa0] sm:$0xff]
    %v881 = vld [vmem:[%s9 + $0xa8] sm:$0xff]
    %v882 = vld [vmem:[%s9 + $0xb0] sm:$0xff]
    %v883 = vld [vmem:[%s9 + $0xb8] sm:$0xff]
    %v884 = vld [vmem:[%s9 + $0xc0] sm:$0xff]
    %v885 = vld [vmem:[%s9 + $0xc8] sm:$0xff]
    %v886 = vld [vmem:[%s9 + $0xd0] sm:$0xff]
    %v887 = vld [vmem:[%s9 + $0xd8] sm:$0xff]
    %v888 = vld [vmem:[%s9 + $0xe0] sm:$0xff]
    %v889 = vld [vmem:[%s9 + $0xe8] sm:$0xff]
    %v890 = vld [vmem:[%s9 + $0xf0] sm:$0xff]
    %v891 = vld [vmem:[%s9 + $0xf8] sm:$0xff]
    %v892 = vld [vmem:[%s9 + $0x100] sm:$0xff]
    %v893 = vld [vmem:[%s9 + $0x108] sm:$0xff]
    %v894 = vld [vmem:[%s9 + $0x110] sm:$0xff]
    %v895 = vld [vmem:[%s9 + $0x118] sm:$0xff]
    %v896 = vld [vmem:[%s9 + $0x120] sm:$0xff]
    %v897 = vld [vmem:[%s9 + $0x128] sm:$0xff]
    %v898 = vld [vmem:[%s9 + $0x130] sm:$0xff]
    %v899 = vld [vmem:[%s9 + $0x138] sm:$0xff]
    %v900 = vld [vmem:[%s9 + $0x140] sm:$0xff]
    %v901 = vld [vmem:[%s9 + $0x148] sm:$0xff]
    %v902 = vld [vmem:[%s9 + $0x150] sm:$0xff]
    %v903 = vld [vmem:[%s9 + $0x158] sm:$0xff]
    %v904 = vld [vmem:[%s9 + $0x160] sm:$0xff]
    %v905 = vld [vmem:[%s9 + $0x168] sm:$0xff]
    %v906 = vld [vmem:[%s9 + $0x170] sm:$0xff]
    %v907 = vld [vmem:[%s9 + $0x178] sm:$0xff]
    %v908 = vld [vmem:[%s9 + $0x180] sm:$0xff]
    %v909 = vld [vmem:[%s9 + $0x188] sm:$0xff]
    %v910 = vld [vmem:[%s9 + $0x190] sm:$0xff]
    %v911 = vld [vmem:[%s9 + $0x198] sm:$0xff]
    %v912 = vld [vmem:[%s9 + $0x1a0] sm:$0xff]
    %v913 = vld [vmem:[%s9 + $0x1a8] sm:$0xff]
    %v914 = vld [vmem:[%s9 + $0x1b0] sm:$0xff]
    %v915 = vld [vmem:[%s9 + $0x1b8] sm:$0xff]
    %v916 = vld [vmem:[%s9 + $0x1c0] sm:$0xff]
    %v917 = vld [vmem:[%s9 + $0x1c8] sm:$0xff]
    %v918 = vld [vmem:[%s9 + $0x1d0] sm:$0xff]
    %v919 = vld [vmem:[%s9 + $0x1d8] sm:$0xff]
    %v920 = vld [vmem:[%s9 + $0x1e0] sm:$0xff]
    %v921 = vld [vmem:[%s9 + $0x1e8] sm:$0xff]
    %v922 = vld [vmem:[%s9 + $0x1f0] sm:$0xff]
    %v923 = vld [vmem:[%s9 + $0x1f8] sm:$0xff]
    %v924 = vld [vmem:[%s9 + $0x200] sm:$0xff]
    %v925 = vld [vmem:[%s9 + $0x208] sm:$0xff]
    %v926 = vld [vmem:[%s9 + $0x210] sm:$0xff]
    %v927 = vld [vmem:[%s9 + $0x218] sm:$0xff]
    %v928 = vld [vmem:[%s9 + $0x220] sm:$0xff]
    %v929 = vld [vmem:[%s9 + $0x228] sm:$0xff]
    %v930 = vld [vmem:[%s9 + $0x230] sm:$0xff]
    %v931 = vld [vmem:[%s9 + $0x238] sm:$0xff]
    %v932 = vld [vmem:[%s9 + $0x240] sm:$0xff]
    %v933 = vld [vmem:[%s9 + $0x248] sm:$0xff]
    %v934 = vld [vmem:[%s9 + $0x250] sm:$0xff]
    %v935 = vld [vmem:[%s9 + $0x258] sm:$0xff]
    %v936 = vld [vmem:[%s9 + $0x260] sm:$0xff]
    %v937 = vld [vmem:[%s9 + $0x268] sm:$0xff]
    %v938 = vld [vmem:[%s9 + $0x270] sm:$0xff]
    %v939 = vld [vmem:[%s9 + $0x278] sm:$0xff]
    %v940 = vld [vmem:[%s9 + $0x280] sm:$0xff]
    %v941 = vld [vmem:[%s9 + $0x288] sm:$0xff]
    %v942 = vld [vmem:[%s9 + $0x290] sm:$0xff]
    %v943 = vld [vmem:[%s9 + $0x298] sm:$0xff]
    %v944 = vld [vmem:[%s9 + $0x2a0] sm:$0xff]
    %v945 = vld [vmem:[%s9 + $0x2a8] sm:$0xff]
    %v946 = vld [vmem:[%s9 + $0x2b0] sm:$0xff]
    %v947 = vld [vmem:[%s9 + $0x2b8] sm:$0xff]
    %v948 = vld [vmem:[%s9 + $0x2c0] sm:$0xff]
    %v949 = vld [vmem:[%s9 + $0x2c8] sm:$0xff]
    %v950 = vld [vmem:[%s9 + $0x2d0] sm:$0xff]
    %v951 = vld [vmem:[%s9 + $0x2d8] sm:$0xff]
    %v952 = vld [vmem:[%s10] sm:$0x3]
    %v954 = vlaneseq
    %v955 = vshrl.u32 %v954, 7
    %v956 = vsub.s32 0, %v955
    %v957 = vrot.slane %v952, %v956
    %v958 = vlaneseq
    %v959 = vshrl.u32 %v958, 7
    %v960 = vsub.s32 1, %v959
    %v961 = vrot.slane %v952, %v960
    %v965 = vcombine.high %v859, %v859
    %v967 = vunpack.c.l.s4 1983009808
    %v968 = vunpack.c.0.s8 %v967
    %v969 = vlaneseq
    %v970 = vshrl.u32 %v969, 7
    %v971 = vsub.s32 %v968, %v970
    %v972 = vrot.slane %v859, %v971
    %v974 = vunpack.c.l.s4 1983009808
    %v975 = vunpack.c.0.s8 %v974
    %v976 = vlaneseq
    %v977 = vshrl.u32 %v976, 7
    %v978 = vsub.s32 %v975, %v977
    %v979 = vrot.slane %v965, %v978
    %v980 = vcombine.high %v972, %v972
    %vm983 = vcmask 916480
    %v984 = vsel %vm983, %v979, 0
    %986 = vmatprep.subr.mxu0 %v861
    %987 = vmatpush1.msra.mxu0 %v860
    %988 = vmatprep.subr.mxu0 %v863
    %989 = vmatpush1.msra.mxu0 %v862
    %990 = vmatprep.subr.mxu0 %v865
    %991 = vmatpush1.msra.mxu0 %v864
    %992 = vmatprep.subr.mxu0 %v867
    %993 = vmatpush1.msra.mxu0 %v866
    %994 = vmatprep.subr.mxu0 %v869
    %995 = vmatpush1.msra.mxu0 %v868
    %996 = vmatprep.subr.mxu0 %v871
    %997 = vmatpush1.msra.mxu0 %v870
    %998 = vmatprep.subr.mxu0 %v873
    %999 = vmatpush1.msra.mxu0 %v872
    %1000 = vmatprep.subr.mxu0 %v875
    %1001 = vmatpush1.msra.mxu0 %v874
    %1002 = vmatprep.subr.mxu0 %v877
    %1003 = vmatpush1.msra.mxu0 %v876
    %1004 = vmatprep.subr.mxu0 %v879
    %1005 = vmatpush1.msra.mxu0 %v878
    %1006 = vmatprep.subr.mxu0 %v881
    %1007 = vmatpush1.msra.mxu0 %v880
    %1008 = vmatprep.subr.mxu0 %v883
    %1009 = vmatpush1.msra.mxu0 %v882
    %1010 = vmatprep.subr.mxu0 %v885
    %1011 = vmatpush1.msra.mxu0 %v884
    %1012 = vmatprep.subr.mxu0 %v887
    %1013 = vmatpush1.msra.mxu0 %v886
    %1014 = vmatprep.subr.mxu0 %v889
    %1015 = vmatpush1.msra.mxu0 %v888
    %1016 = vmatprep.subr.mxu0 %v891
    %1017 = vmatpush1.msra.mxu0 %v890
    %1018 = vmatprep.subr.mxu0 %v893
    %1019 = vmatpush1.msra.mxu0 %v892
    %1020 = vmatprep.subr.mxu0 %v895
    %1021 = vmatpush1.msra.mxu0 %v894
    %1022 = vmatprep.subr.mxu0 %v897
    %1023 = vmatpush1.msra.mxu0 %v896
    %1024 = vmatprep.subr.mxu0 %v899
    %1025 = vmatpush1.msra.mxu0 %v898
    %1026 = vmatprep.subr.mxu0 %v901
    %1027 = vmatpush1.msra.mxu0 %v900
    %1028 = vmatprep.subr.mxu0 %v903
    %1029 = vmatpush1.msra.mxu0 %v902
    %1030 = vmatprep.subr.mxu0 %v905
    %1031 = vmatpush1.msra.mxu0 %v904
    %1032 = vmatprep.subr.mxu0 %v907
    %1033 = vmatpush1.msra.mxu0 %v906
    %1034 = vmatprep.subr.mxu0 %v909
    %1035 = vmatpush1.msra.mxu0 %v908
    %1036 = vmatprep.subr.mxu0 %v911
    %1037 = vmatpush1.msra.mxu0 %v910
    %1038 = vmatprep.subr.mxu0 %v913
    %1039 = vmatpush1.msra.mxu0 %v912
    %1040 = vmatprep.subr.mxu0 %v915
    %1041 = vmatpush1.msra.mxu0 %v914
    %1042 = vmatprep.subr.mxu0 %v917
    %1043 = vmatpush1.msra.mxu0 %v916
    %1044 = vmatprep.subr.mxu0 %v919
    %1045 = vmatpush1.msra.mxu0 %v918
    %1046 = vmatprep.subr.mxu0 %v921
    %1047 = vmatpush1.msra.mxu0 %v920
    %1048 = vmatprep.subr.mxu0 %v923
    %1049 = vmatpush1.msra.mxu0 %v922
    %1050 = vmatprep.mubr.f32.mxu0 %v980
    %1051 = vmatmul.mubr.f32.gmra.mrb[0].mxu0 %v972
    %v1052 = vpop.f32.mrb[0].mxu0
    %v1053 = vadd.f32 %v957, %v1052
    %v1054 = vpop.f32.mrb[0].mxu0
    %v1055 = vadd.f32 %v961, %v1054
    %1056 = vdwg.mxu0
    %1057 = vmatprep.subr.mxu0 %v925
    %1058 = vmatpush1.msra.mxu0 %v924
    %1059 = vmatprep.subr.mxu0 %v927
    %1060 = vmatpush1.msra.mxu0 %v926
    %1061 = vmatprep.subr.mxu0 %v929
    %1062 = vmatpush1.msra.mxu0 %v928
    %1063 = vmatprep.subr.mxu0 %v931
    %1064 = vmatpush1.msra.mxu0 %v930
    %1065 = vmatprep.subr.mxu0 %v933
    %1066 = vmatpush1.msra.mxu0 %v932
    %1067 = vmatprep.subr.mxu0 %v935
    %1068 = vmatpush1.msra.mxu0 %v934
    %1069 = vmatprep.subr.mxu0 %v937
    %1070 = vmatpush1.msra.mxu0 %v936
    %1071 = vmatprep.subr.mxu0 %v939
    %1072 = vmatpush1.msra.mxu0 %v938
    %1073 = vmatprep.subr.mxu0 %v941
    %1074 = vmatpush1.msra.mxu0 %v940
    %1075 = vmatprep.subr.mxu0 %v943
    %1076 = vmatpush1.msra.mxu0 %v942
    %1077 = vmatprep.subr.mxu0 %v945
    %1078 = vmatpush1.msra.mxu0 %v944
    %1079 = vmatprep.subr.mxu0 %v947
    %1080 = vmatpush1.msra.mxu0 %v946
    %1081 = vmatprep.subr.mxu0 %v949
    %1082 = vmatpush1.msra.mxu0 %v948
    %1083 = vmatprep.subr.mxu0 %v951
    %1084 = vmatpush1.msra.mxu0 %v950
    %1085 = vmatprep.subr.mxu0 0.0
    %1086 = vmatpush1.msra.mxu0 0.0
    %1087 = vmatprep.subr.mxu0 0.0
    %1088 = vmatpush1.msra.mxu0 0.0
    %1089 = vmatprep.subr.mxu0 0.0
    %1090 = vmatpush1.msra.mxu0 0.0
    %1091 = vmatprep.subr.mxu0 0.0
    %1092 = vmatpush1.msra.mxu0 0.0
    %1093 = vmatprep.subr.mxu0 0.0
    %1094 = vmatpush1.msra.mxu0 0.0
    %1095 = vmatprep.subr.mxu0 0.0
    %1096 = vmatpush1.msra.mxu0 0.0
    %1097 = vmatprep.subr.mxu0 0.0
    %1098 = vmatpush1.msra.mxu0 0.0
    %1099 = vmatprep.subr.mxu0 0.0
    %1100 = vmatpush1.msra.mxu0 0.0
    %1101 = vmatprep.subr.mxu0 0.0
    %1102 = vmatpush1.msra.mxu0 0.0
    %1103 = vmatprep.subr.mxu0 0.0
    %1104 = vmatpush1.msra.mxu0 0.0
    %1105 = vmatprep.subr.mxu0 0.0
    %1106 = vmatpush1.msra.mxu0 0.0
    %1107 = vmatprep.subr.mxu0 0.0
    %1108 = vmatpush1.msra.mxu0 0.0
    %1109 = vmatprep.subr.mxu0 0.0
    %1110 = vmatpush1.msra.mxu0 0.0
    %1111 = vmatprep.subr.mxu0 0.0
    %1112 = vmatpush1.msra.mxu0 0.0
    %1113 = vmatprep.subr.mxu0 0.0
    %1114 = vmatpush1.msra.mxu0 0.0
    %1115 = vmatprep.subr.mxu0 0.0
    %1116 = vmatpush1.msra.mxu0 0.0
    %1117 = vmatprep.subr.mxu0 0.0
    %1118 = vmatpush1.msra.mxu0 0.0
    %1119 = vmatprep.subr.mxu0 0.0
    %1120 = vmatpush1.msra.mxu0 0.0
    %1121 = vmatprep.mubr.f32.mxu0 0.0
    %1122 = vmatmul.mubr.f32.gmra.mrb[0].mxu0 %v984
    %v1123 = vpop.f32.mrb[0].mxu0
    %v1124 = vadd.f32 %v1053, %v1123
    %v1125 = vpop.f32.mrb[0].mxu0
    %v1126 = vadd.f32 %v1055, %v1125
    %1127 = vdwg.mxu0
    %v1128 = vmax.f32 %v1124, 0.0
    %v1129 = vmax.f32 %v1126, 0.0
    %v1130 = vld [vmem:[%s11] sm:$0xff]
    %v1131 = vld [vmem:[%s11 + $0x8] sm:$0xff]
    %v1132 = vld [vmem:[%s11 + $0x10] sm:$0xff]
    %v1133 = vld [vmem:[%s11 + $0x18] sm:$0xff]
    %v1134 = vld [vmem:[%s11 + $0x20] sm:$0xff]
    %v1135 = vld [vmem:[%s11 + $0x28] sm:$0xff]
    %v1136 = vld [vmem:[%s11 + $0x30] sm:$0xff]
    %v1137 = vld [vmem:[%s11 + $0x38] sm:$0xff]
    %v1138 = vld [vmem:[%s11 + $0x40] sm:$0xff]
    %v1139 = vld [vmem:[%s11 + $0x48] sm:$0xff]
    %v1140 = vld [vmem:[%s11 + $0x50] sm:$0xff]
    %v1141 = vld [vmem:[%s11 + $0x58] sm:$0xff]
    %v1142 = vld [vmem:[%s11 + $0x60] sm:$0xff]
    %v1143 = vld [vmem:[%s11 + $0x68] sm:$0xff]
    %v1144 = vld [vmem:[%s11 + $0x70] sm:$0xff]
    %v1145 = vld [vmem:[%s11 + $0x78] sm:$0xff]
    %v1146 = vld [vmem:[%s11 + $0x80] sm:$0xff]
    %v1147 = vld [vmem:[%s11 + $0x88] sm:$0xff]
    %v1148 = vld [vmem:[%s11 + $0x90] sm:$0xff]
    %v1149 = vld [vmem:[%s11 + $0x98] sm:$0xff]
    %v1150 = vld [vmem:[%s11 + $0xa0] sm:$0xff]
    %v1151 = vld [vmem:[%s11 + $0xa8] sm:$0xff]
    %v1152 = vld [vmem:[%s11 + $0xb0] sm:$0xff]
    %v1153 = vld [vmem:[%s11 + $0xb8] sm:$0xff]
    %v1154 = vld [vmem:[%s11 + $0xc0] sm:$0xff]
    %v1155 = vld [vmem:[%s12] sm:$0x1]
    %v1157 = vlaneseq
    %v1158 = vshrl.u32 %v1157, 7
    %v1159 = vsub.s32 0, %v1158
    %v1160 = vrot.slane %v1155, %v1159
    %v1163 = vsel %vm388, %v1129, 0
    %1165 = vmatprep.subr.mxu0 0.0
    %1166 = vmatpush1.msra.mxu0 %v1130
    %1167 = vmatprep.subr.mxu0 0.0
    %1168 = vmatpush1.msra.mxu0 %v1131
    %1169 = vmatprep.subr.mxu0 0.0
    %1170 = vmatpush1.msra.mxu0 %v1132
    %1171 = vmatprep.subr.mxu0 0.0
    %1172 = vmatpush1.msra.mxu0 %v1133
    %1173 = vmatprep.subr.mxu0 0.0
    %1174 = vmatpush1.msra.mxu0 %v1134
    %1175 = vmatprep.subr.mxu0 0.0
    %1176 = vmatpush1.msra.mxu0 %v1135
    %1177 = vmatprep.subr.mxu0 0.0
    %1178 = vmatpush1.msra.mxu0 %v1136
    %1179 = vmatprep.subr.mxu0 0.0
    %1180 = vmatpush1.msra.mxu0 %v1137
    %1181 = vmatprep.subr.mxu0 0.0
    %1182 = vmatpush1.msra.mxu0 %v1138
    %1183 = vmatprep.subr.mxu0 0.0
    %1184 = vmatpush1.msra.mxu0 %v1139
    %1185 = vmatprep.subr.mxu0 0.0
    %1186 = vmatpush1.msra.mxu0 %v1140
    %1187 = vmatprep.subr.mxu0 0.0
    %1188 = vmatpush1.msra.mxu0 %v1141
    %1189 = vmatprep.subr.mxu0 0.0
    %1190 = vmatpush1.msra.mxu0 %v1142
    %1191 = vmatprep.subr.mxu0 0.0
    %1192 = vmatpush1.msra.mxu0 %v1143
    %1193 = vmatprep.subr.mxu0 0.0
    %1194 = vmatpush1.msra.mxu0 %v1144
    %1195 = vmatprep.subr.mxu0 0.0
    %1196 = vmatpush1.msra.mxu0 %v1145
    %1197 = vmatprep.subr.mxu0 0.0
    %1198 = vmatpush1.msra.mxu0 %v1146
    %1199 = vmatprep.subr.mxu0 0.0
    %1200 = vmatpush1.msra.mxu0 %v1147
    %1201 = vmatprep.subr.mxu0 0.0
    %1202 = vmatpush1.msra.mxu0 %v1148
    %1203 = vmatprep.subr.mxu0 0.0
    %1204 = vmatpush1.msra.mxu0 %v1149
    %1205 = vmatprep.subr.mxu0 0.0
    %1206 = vmatpush1.msra.mxu0 %v1150
    %1207 = vmatprep.subr.mxu0 0.0
    %1208 = vmatpush1.msra.mxu0 %v1151
    %1209 = vmatprep.subr.mxu0 0.0
    %1210 = vmatpush1.msra.mxu0 %v1152
    %1211 = vmatprep.subr.mxu0 0.0
    %1212 = vmatpush1.msra.mxu0 %v1153
    %1213 = vmatprep.subr.mxu0 0.0
    %1214 = vmatpush1.msra.mxu0 %v1154
    %1215 = vmatprep.subr.mxu0 0.0
    %1216 = vmatpush1.msra.mxu0 0.0
    %1217 = vmatprep.subr.mxu0 0.0
    %1218 = vmatpush1.msra.mxu0 0.0
    %1219 = vmatprep.subr.mxu0 0.0
    %1220 = vmatpush1.msra.mxu0 0.0
    %1221 = vmatprep.subr.mxu0 0.0
    %1222 = vmatpush1.msra.mxu0 0.0
    %1223 = vmatprep.subr.mxu0 0.0
    %1224 = vmatpush1.msra.mxu0 0.0
    %1225 = vmatprep.subr.mxu0 0.0
    %1226 = vmatpush1.msra.mxu0 0.0
    %1227 = vmatprep.subr.mxu0 0.0
    %1228 = vmatpush1.msra.mxu0 0.0
    %1229 = vmatprep.mubr.f32.mxu0 %v1163
    %1230 = vmatmul.mubr.f32.gmra.mrb[0].mxu0 %v1128
    %v1231 = vpop.f32.mrb[0].mxu0
    %v1232 = vadd.f32 %v1160, %v1231
    %v1233 = vpop.f32.mrb[0].mxu0
    %1234 = vdwg.mxu0
    %vm1235 = vcmask 156672
    %1236 = vst.msk [vmem:[#allocation3] sm:$0x3] %vm1235, %v1232
    // Predicated region
    $region54: #{tpu_custom_call.1} parent=1 // pred_check
      _
    $region55: #{tpu_custom_call.1} parent=1 // pred_check_branch
      %1238 = sbr.rel (0) target = $region57
    $region56: #{tpu_custom_call.1} parent=1 // pred_region
      %s1240 = ssub.s32 32, 32
      %1241 = vsyncadd [#allocation4], %s1240
      %s1243 = sshll.u32 [#allocation3], 4
      %s1244 = int_to_ptr.vmem [resolvable:$true] %s1243
      %1246 = dma.vmem_to_hbm [thread:$0]  %s1244, 32, %s13, [#allocation4]
    $region57: #{tpu_custom_call.1} parent=1 // pred_fallthru
      _
    // Predicated region
    $region58: #{tpu_custom_call.1} parent=1 // pred_check
      _
    $region59: #{tpu_custom_call.1} parent=1 // pred_check_branch
      %1248 = sbr.rel (0) target = $region61
    $region60: #{tpu_custom_call.1} parent=1 // pred_region
      %1249 = dma.done [#allocation4], 32
    $region61: #{tpu_custom_call.1} parent=1 // pred_fallthru
      _
    %1250 = vsyncpa [#allocation4], 1

</llo_original>
